<compile_context>
chip_gen: v7x
topology: tpu7x:2x2x1
jax: 0.10.0
libtpu: 0.0.40
codegen_flags: <defaults>
</compile_context>

<pallas_src>
import numpy as np
import jax
import jax.numpy as jnp
from jax import lax
from jax.experimental import pallas as pl
from jax.experimental.pallas import tpu as pltpu


def _round_up(x, m):
    return (x + m - 1) // m * m


def _pad_gate_rows(w, H, Hp):
    """(4H, ...) -> (4Hp, ...): gate g's H rows land at [g*Hp : g*Hp + H], zeros elsewhere."""
    zeros = jnp.zeros((Hp - H,) + w.shape[1:], w.dtype)
    parts = []
    for g in range(4):
        parts.append(w[g * H:(g + 1) * H])
        parts.append(zeros)
    return jnp.concatenate(parts, axis=0)


def lstm_chunk_kernel(gx_ref, len_ref, whh_ref, out_ref, h_ref, c_ref):
    """One grid step == one (batch block, time block). PyTorch gate order i, f, g, o.

    gx_ref : (T_BLK, B_BLK, 4*Hp)  pre-projected input gates (x @ W_ih^T + bias)
    len_ref: (B_BLK, 1) int32      sequence lengths
    whh_ref: (Hp, 4*Hp)            W_hh^T, gate-padded
    out_ref: (T_BLK, B_BLK, Hp)    per-step hidden outputs (0 where padded)
    h_ref  : (B_BLK, Hp)           resident output == recurrent h carry
    c_ref  : (B_BLK, Hp)           resident output == recurrent c carry
    """
    tb = pl.program_id(1)
    t_blk = gx_ref.shape[0]
    Hp = h_ref.shape[-1]

    @pl.when(tb == 0)
    def _():
        h_ref[...] = jnp.zeros_like(h_ref)
        c_ref[...] = jnp.zeros_like(c_ref)

    lens = len_ref[...]          # (B_BLK, 1) int32, VMEM-resident
    whh = whh_ref[...]           # (Hp, 4Hp), VMEM-resident
    t0 = tb * t_blk

    def step(k, carry):
        h, c = carry
        gates = gx_ref[k] + jnp.dot(h, whh, preferred_element_type=jnp.float32)
        i = jax.nn.sigmoid(gates[:, 0 * Hp:1 * Hp])
        f = jax.nn.sigmoid(gates[:, 1 * Hp:2 * Hp])
        g = jnp.tanh(gates[:, 2 * Hp:3 * Hp])
        o = jax.nn.sigmoid(gates[:, 3 * Hp:4 * Hp])
        c_new = f * c + i * g
        h_new = o * jnp.tanh(c_new)
        valid = lens > (t0 + k)                       # (B_BLK, 1) bool
        h_next = jnp.where(valid, h_new, h)           # carry state past end of sequence
        c_next = jnp.where(valid, c_new, c)
        out_ref[k] = jnp.where(valid, h_new, 0.0)     # padded positions -> 0
        return h_next, c_next

    h, c = lax.fori_loop(0, t_blk, step, (h_ref[...], c_ref[...]), unroll=True)
    h_ref[...] = h
    c_ref[...] = c


def rnn_encoder_forward(xs, xs_len, params, *, t_blk=8, b_blk=8):
    """xs: (B, T) int32 token ids (0 == padding_idx), xs_len: (B,) lengths."""
    emb = params["embedding"]                  # (V, E), row 0 zeroed (padding_idx=0)
    w_ih = params["w_ih"]                      # (4H, E)
    w_hh = params["w_hh"]                      # (4H, H)
    bias = params["b_ih"] + params["b_hh"]     # (4H,)

    B, T = xs.shape
    E = emb.shape[1]
    H = w_hh.shape[1]
    Hp = _round_up(H, 128)
    Tp = _round_up(T, t_blk)
    Bp = _round_up(B, b_blk)

    # --- weight prep: per-gate zero-padding so each gate sits on a 128-lane boundary ---
    w_ih_p = _pad_gate_rows(w_ih, H, Hp)                                   # (4Hp, E)
    w_hh_p = _pad_gate_rows(jnp.pad(w_hh, ((0, 0), (0, Hp - H))), H, Hp)   # (4Hp, Hp)
    bias_p = _pad_gate_rows(bias[:, None], H, Hp)[:, 0]                    # (4Hp,)
    whh_t = w_hh_p.T                                                       # (Hp, 4Hp)

    # --- embedding gather (time-major: transpose the int ids, not the activations) ---
    xs_tm = xs.T.astype(jnp.int32)                  # (T, B)
    exs = jnp.take(emb, xs_tm, axis=0)              # (T, B, E)

    # --- input projection hoisted out of the recurrence: one big MXU matmul ---
    gx = jnp.dot(exs.reshape(T * B, E), w_ih_p.T,
                 preferred_element_type=jnp.float32) + bias_p[None]        # (T*B, 4Hp)
    gx = gx.reshape(T, B, 4 * Hp)
    gx = jnp.pad(gx, ((0, Tp - T), (0, Bp - B), (0, 0)))                   # (Tp, Bp, 4Hp)

    # padded batch rows get length 0 -> never valid, state/output stay 0
    lens = jnp.pad(xs_len.astype(jnp.int32), (0, Bp - B)).reshape(Bp, 1)

    n_b = Bp // b_blk
    n_t = Tp // t_blk

    grid_spec = pltpu.PrefetchScalarGridSpec(
        num_scalar_prefetch=0,
        grid=(n_b, n_t),
        in_specs=[
            pl.BlockSpec((t_blk, b_blk, 4 * Hp), lambda b, t: (t, b, 0)),  # gates(x)
            pl.BlockSpec((b_blk, 1), lambda b, t: (b, 0)),                 # lengths
            pl.BlockSpec((Hp, 4 * Hp), lambda b, t: (0, 0)),               # W_hh^T
        ],
        out_specs=[
            pl.BlockSpec((t_blk, b_blk, Hp), lambda b, t: (t, b, 0)),      # per-step outputs
            pl.BlockSpec((b_blk, Hp), lambda b, t: (b, 0)),                # h_n (resident carry)
            pl.BlockSpec((b_blk, Hp), lambda b, t: (b, 0)),                # c_n (resident carry)
        ],
    )

    out_p, h_p, c_p = pl.pallas_call(
        lstm_chunk_kernel,
        out_shape=(
            jax.ShapeDtypeStruct((Tp, Bp, Hp), jnp.float32),
            jax.ShapeDtypeStruct((Bp, Hp), jnp.float32),
            jax.ShapeDtypeStruct((Bp, Hp), jnp.float32),
        ),
        grid_spec=grid_spec,
        compiler_params=pltpu.CompilerParams(
            dimension_semantics=("parallel", "arbitrary")),
    )(gx, lens, whh_t)

    padded_hs = out_p[:T, :B, :H]          # time-major (T, B, H), zeros at padded steps
    h_n = h_p[:B, :H][None]                # (1, B, H) == nn.LSTM (num_layers*dirs, B, H)
    c_n = c_p[:B, :H][None]
    return padded_hs, (h_n, c_n)


def reference_forward(xs, xs_len, params):
    """Pure-JAX reference (lax.scan LSTM with the same masking semantics)."""
    emb = params["embedding"]
    exs = jnp.take(emb, xs, axis=0)
    x_tm = jnp.transpose(exs, (1, 0, 2))
    B, T = xs.shape
    H = params["w_hh"].shape[1]
    w_ih_t = params["w_ih"].T
    w_hh_t = params["w_hh"].T
    b = (params["b_ih"] + params["b_hh"])[None]
    lens = xs_len.astype(jnp.int32)[:, None]

    def step(carry, inp):
        h, c = carry
        x, t = inp
        gates = x @ w_ih_t + h @ w_hh_t + b
        i = jax.nn.sigmoid(gates[:, :H])
        f = jax.nn.sigmoid(gates[:, H:2 * H])
        g = jnp.tanh(gates[:, 2 * H:3 * H])
        o = jax.nn.sigmoid(gates[:, 3 * H:])
        c_new = f * c + i * g
        h_new = o * jnp.tanh(c_new)
        valid = lens > t
        h2 = jnp.where(valid, h_new, h)
        c2 = jnp.where(valid, c_new, c)
        out = jnp.where(valid, h_new, 0.0)
        return (h2, c2), out

    init = (jnp.zeros((B, H), jnp.float32), jnp.zeros((B, H), jnp.float32))
    (h, c), outs = lax.scan(step, init, (x_tm, jnp.arange(T)))
    return outs, h[None], c[None]


if __name__ == "__main__":
    n_vocab, embed_size, hidden_size = 50, 32, 32
    B, T = 8, 12

    key = jax.random.PRNGKey(0)
    k1, k2, k3, k4, k5, k6, k7 = jax.random.split(key, 7)
    std = 1.0 / np.sqrt(hidden_size)

    emb = jax.random.normal(k1, (n_vocab, embed_size), jnp.float32)
    emb = emb.at[0].set(0.0)  # padding_idx=0 row
    params = dict(
        embedding=emb,
        w_ih=jax.random.uniform(k2, (4 * hidden_size, embed_size), jnp.float32, -std, std),
        w_hh=jax.random.uniform(k3, (4 * hidden_size, hidden_size), jnp.float32, -std, std),
        b_ih=jax.random.uniform(k4, (4 * hidden_size,), jnp.float32, -std, std),
        b_hh=jax.random.uniform(k5, (4 * hidden_size,), jnp.float32, -std, std),
    )

    # pack_padded_sequence requires lengths sorted descending
    xs_len = jnp.sort(jax.random.randint(k6, (B,), 3, T + 1))[::-1]
    xs = jax.random.randint(k7, (B, T), 1, n_vocab)
    pos = jnp.arange(T)[None, :]
    xs = jnp.where(pos < xs_len[:, None], xs, 0).astype(jnp.int32)

    padded_hs, (h_n, c_n) = rnn_encoder_forward(xs, xs_len, params)
    jax.block_until_ready((padded_hs, h_n, c_n))

    ref_out, ref_h, ref_c = reference_forward(xs, xs_len, params)
    np.testing.assert_allclose(np.asarray(padded_hs), np.asarray(ref_out), rtol=1e-5, atol=1e-5)
    np.testing.assert_allclose(np.asarray(h_n), np.asarray(ref_h), rtol=1e-5, atol=1e-5)
    np.testing.assert_allclose(np.asarray(c_n), np.asarray(ref_c), rtol=1e-5, atol=1e-5)

    print("KERNEL_OK")
</pallas_src>

<mosaic_0001>
module attributes {stable_mosaic.version = 11 : i64} {
  func.func @lstm_chunk_kernel(%arg0: i32, %arg1: i32, %arg2: memref<8x8x512xf32, #tpu.memory_space<vmem>>, %arg3: memref<8x1xi32, #tpu.memory_space<vmem>>, %arg4: memref<128x512xf32, #tpu.memory_space<vmem>>, %arg5: memref<8x8x128xf32, #tpu.memory_space<vmem>>, %arg6: memref<8x128xf32, #tpu.memory_space<vmem>>, %arg7: memref<8x128xf32, #tpu.memory_space<vmem>>) attributes {dimension_semantics = [#tpu.dimension_semantics<parallel>, #tpu.dimension_semantics<arbitrary>], iteration_bounds = array<i64: 1, 2>, scalar_prefetch = 0 : i64, scratch_operands = 0 : i64, tpu.core_type = #tpu.core_type<tc>, window_params = [{transform_indices = @transform_0, window_bounds = array<i64: 8, 8, 512>}, {transform_indices = @transform_1, window_bounds = array<i64: 8, 1>}, {pipeline_mode = #tpu.pipeline_mode<synchronous>, transform_indices = @transform_2, window_bounds = array<i64: 128, 512>}, {transform_indices = @transform_3, window_bounds = array<i64: 8, 8, 128>}, {transform_indices = @transform_4, window_bounds = array<i64: 8, 128>}, {transform_indices = @transform_5, window_bounds = array<i64: 8, 128>}]} {
    %c0_i32 = arith.constant 0 : i32
    %0 = arith.cmpi eq, %arg1, %c0_i32 : i32
    %1 = arith.extui %0 : i1 to i32
    %c0_i32_0 = arith.constant 0 : i32
    %2 = arith.cmpi ne, %1, %c0_i32_0 : i32
    scf.if %2 {
      %cst_85 = arith.constant 0.000000e+00 : f32
      %386 = vector.broadcast %cst_85 : f32 to vector<8x128xf32>
      %c0_86 = arith.constant 0 : index
      %c0_87 = arith.constant 0 : index
      %387 = vector.load %arg6[%c0_86, %c0_87] : memref<8x128xf32, #tpu.memory_space<vmem>>, vector<8x128xf32>
      tpu.vector_store %arg6[%c0_86, %c0_87], %386 {strides = array<i32>} : memref<8x128xf32, #tpu.memory_space<vmem>>, vector<8x128xf32>,
      %cst_88 = arith.constant 0.000000e+00 : f32
      %388 = vector.broadcast %cst_88 : f32 to vector<8x128xf32>
      %c0_89 = arith.constant 0 : index
      %c0_90 = arith.constant 0 : index
      %389 = vector.load %arg7[%c0_89, %c0_90] : memref<8x128xf32, #tpu.memory_space<vmem>>, vector<8x128xf32>
      tpu.vector_store %arg7[%c0_89, %c0_90], %388 {strides = array<i32>} : memref<8x128xf32, #tpu.memory_space<vmem>>, vector<8x128xf32>,
    } else {
    }
    %c0 = arith.constant 0 : index
    %c0_1 = arith.constant 0 : index
    %3 = vector.load %arg3[%c0, %c0_1] : memref<8x1xi32, #tpu.memory_space<vmem>>, vector<8x1xi32>
    %c0_2 = arith.constant 0 : index
    %c0_3 = arith.constant 0 : index
    %4 = vector.load %arg4[%c0_2, %c0_3] : memref<128x512xf32, #tpu.memory_space<vmem>>, vector<128x512xf32>
    %c8_i32 = arith.constant 8 : i32
    %5 = arith.muli %arg1, %c8_i32 : i32
    %c0_4 = arith.constant 0 : index
    %c0_5 = arith.constant 0 : index
    %6 = vector.load %arg6[%c0_4, %c0_5] : memref<8x128xf32, #tpu.memory_space<vmem>>, vector<8x128xf32>
    %c0_6 = arith.constant 0 : index
    %c0_7 = arith.constant 0 : index
    %7 = vector.load %arg7[%c0_6, %c0_7] : memref<8x128xf32, #tpu.memory_space<vmem>>, vector<8x128xf32>
    %c0_i32_8 = arith.constant 0 : i32
    %8 = arith.index_cast %c0_i32_8 : i32 to index
    %c0_9 = arith.constant 0 : index
    %c0_10 = arith.constant 0 : index
    %9 = vector.load %arg2[%8, %c0_9, %c0_10] : memref<8x8x512xf32, #tpu.memory_space<vmem>>, vector<1x8x512xf32>
    %10 = vector.shape_cast %9 : vector<1x8x512xf32> to vector<8x512xf32>
    %cst = arith.constant dense<0.000000e+00> : vector<8x512xf32>
    %11 = tpu.matmul %6, %4, %cst {dimension_numbers = #tpu.dot_dimension_numbers<[1], [0], [0], [1], [0, 0, 1, 1], [], []>} : vector<8x128xf32>, vector<128x512xf32>, vector<8x512xf32> -> vector<8x512xf32>
    %12 = arith.addf %10, %11 : vector<8x512xf32>
    %13 = vector.extract_strided_slice %12 {offsets = [0, 0], sizes = [8, 128], strides = [1, 1]} : vector<8x512xf32> to vector<8x128xf32>
    %14 = arith.negf %13 : vector<8x128xf32>
    %15 = math.exp %14 : vector<8x128xf32>
    %cst_11 = arith.constant 1.000000e+00 : f32
    %16 = vector.broadcast %cst_11 : f32 to vector<8x128xf32>
    %17 = arith.addf %16, %15 : vector<8x128xf32>
    %18 = arith.divf %16, %17 : vector<8x128xf32>
    %19 = vector.extract_strided_slice %12 {offsets = [0, 128], sizes = [8, 128], strides = [1, 1]} : vector<8x512xf32> to vector<8x128xf32>
    %20 = arith.negf %19 : vector<8x128xf32>
    %21 = math.exp %20 : vector<8x128xf32>
    %cst_12 = arith.constant 1.000000e+00 : f32
    %22 = vector.broadcast %cst_12 : f32 to vector<8x128xf32>
    %23 = arith.addf %22, %21 : vector<8x128xf32>
    %24 = arith.divf %22, %23 : vector<8x128xf32>
    %25 = vector.extract_strided_slice %12 {offsets = [0, 256], sizes = [8, 128], strides = [1, 1]} : vector<8x512xf32> to vector<8x128xf32>
    %26 = math.tanh %25 : vector<8x128xf32>
    %27 = vector.extract_strided_slice %12 {offsets = [0, 384], sizes = [8, 128], strides = [1, 1]} : vector<8x512xf32> to vector<8x128xf32>
    %28 = arith.negf %27 : vector<8x128xf32>
    %29 = math.exp %28 : vector<8x128xf32>
    %cst_13 = arith.constant 1.000000e+00 : f32
    %30 = vector.broadcast %cst_13 : f32 to vector<8x128xf32>
    %31 = arith.addf %30, %29 : vector<8x128xf32>
    %32 = arith.divf %30, %31 : vector<8x128xf32>
    %33 = arith.mulf %24, %7 : vector<8x128xf32>
    %34 = arith.mulf %18, %26 : vector<8x128xf32>
    %35 = arith.addf %33, %34 : vector<8x128xf32>
    %36 = math.tanh %35 : vector<8x128xf32>
    %37 = arith.mulf %32, %36 : vector<8x128xf32>
    %38 = arith.addi %5, %c0_i32_8 : i32
    %39 = vector.broadcast %38 : i32 to vector<8x1xi32>
    %40 = arith.cmpi sgt, %3, %39 : vector<8x1xi32>
    %41 = vector.shape_cast %40 : vector<8x1xi1> to vector<8x1xi1>
    %42 = vector.broadcast %41 : vector<8x1xi1> to vector<8x128xi1>
    %43 = arith.select %42, %37, %6 : vector<8x128xi1>, vector<8x128xf32>
    %44 = vector.shape_cast %40 : vector<8x1xi1> to vector<8x1xi1>
    %45 = vector.broadcast %44 : vector<8x1xi1> to vector<8x128xi1>
    %46 = arith.select %45, %35, %7 : vector<8x128xi1>, vector<8x128xf32>
    %cst_14 = arith.constant 0.000000e+00 : f32
    %47 = vector.shape_cast %40 : vector<8x1xi1> to vector<8x1xi1>
    %48 = vector.broadcast %47 : vector<8x1xi1> to vector<8x128xi1>
    %49 = vector.broadcast %cst_14 : f32 to vector<8x128xf32>
    %50 = arith.select %48, %37, %49 : vector<8x128xi1>, vector<8x128xf32>
    %51 = arith.index_cast %c0_i32_8 : i32 to index
    %c0_15 = arith.constant 0 : index
    %c0_16 = arith.constant 0 : index
    %52 = vector.load %arg5[%51, %c0_15, %c0_16] : memref<8x8x128xf32, #tpu.memory_space<vmem>>, vector<1x8x128xf32>
    %53 = vector.shape_cast %52 : vector<1x8x128xf32> to vector<8x128xf32>
    %54 = vector.shape_cast %50 : vector<8x128xf32> to vector<1x8x128xf32>
    tpu.vector_store %arg5[%51, %c0_15, %c0_16], %54 {strides = array<i32>} : memref<8x8x128xf32, #tpu.memory_space<vmem>>, vector<1x8x128xf32>,
    %c1_i32 = arith.constant 1 : i32
    %55 = arith.index_cast %c1_i32 : i32 to index
    %c0_17 = arith.constant 0 : index
    %c0_18 = arith.constant 0 : index
    %56 = vector.load %arg2[%55, %c0_17, %c0_18] : memref<8x8x512xf32, #tpu.memory_space<vmem>>, vector<1x8x512xf32>
    %57 = vector.shape_cast %56 : vector<1x8x512xf32> to vector<8x512xf32>
    %cst_19 = arith.constant dense<0.000000e+00> : vector<8x512xf32>
    %58 = tpu.matmul %43, %4, %cst_19 {dimension_numbers = #tpu.dot_dimension_numbers<[1], [0], [0], [1], [0, 0, 1, 1], [], []>} : vector<8x128xf32>, vector<128x512xf32>, vector<8x512xf32> -> vector<8x512xf32>
    %59 = arith.addf %57, %58 : vector<8x512xf32>
    %60 = vector.extract_strided_slice %59 {offsets = [0, 0], sizes = [8, 128], strides = [1, 1]} : vector<8x512xf32> to vector<8x128xf32>
    %61 = arith.negf %60 : vector<8x128xf32>
    %62 = math.exp %61 : vector<8x128xf32>
    %cst_20 = arith.constant 1.000000e+00 : f32
    %63 = vector.broadcast %cst_20 : f32 to vector<8x128xf32>
    %64 = arith.addf %63, %62 : vector<8x128xf32>
    %65 = arith.divf %63, %64 : vector<8x128xf32>
    %66 = vector.extract_strided_slice %59 {offsets = [0, 128], sizes = [8, 128], strides = [1, 1]} : vector<8x512xf32> to vector<8x128xf32>
    %67 = arith.negf %66 : vector<8x128xf32>
    %68 = math.exp %67 : vector<8x128xf32>
    %cst_21 = arith.constant 1.000000e+00 : f32
    %69 = vector.broadcast %cst_21 : f32 to vector<8x128xf32>
    %70 = arith.addf %69, %68 : vector<8x128xf32>
    %71 = arith.divf %69, %70 : vector<8x128xf32>
    %72 = vector.extract_strided_slice %59 {offsets = [0, 256], sizes = [8, 128], strides = [1, 1]} : vector<8x512xf32> to vector<8x128xf32>
    %73 = math.tanh %72 : vector<8x128xf32>
    %74 = vector.extract_strided_slice %59 {offsets = [0, 384], sizes = [8, 128], strides = [1, 1]} : vector<8x512xf32> to vector<8x128xf32>
    %75 = arith.negf %74 : vector<8x128xf32>
    %76 = math.exp %75 : vector<8x128xf32>
    %cst_22 = arith.constant 1.000000e+00 : f32
    %77 = vector.broadcast %cst_22 : f32 to vector<8x128xf32>
    %78 = arith.addf %77, %76 : vector<8x128xf32>
    %79 = arith.divf %77, %78 : vector<8x128xf32>
    %80 = arith.mulf %71, %46 : vector<8x128xf32>
    %81 = arith.mulf %65, %73 : vector<8x128xf32>
    %82 = arith.addf %80, %81 : vector<8x128xf32>
    %83 = math.tanh %82 : vector<8x128xf32>
    %84 = arith.mulf %79, %83 : vector<8x128xf32>
    %85 = arith.addi %5, %c1_i32 : i32
    %86 = vector.broadcast %85 : i32 to vector<8x1xi32>
    %87 = arith.cmpi sgt, %3, %86 : vector<8x1xi32>
    %88 = vector.shape_cast %87 : vector<8x1xi1> to vector<8x1xi1>
    %89 = vector.broadcast %88 : vector<8x1xi1> to vector<8x128xi1>
    %90 = arith.select %89, %84, %43 : vector<8x128xi1>, vector<8x128xf32>
    %91 = vector.shape_cast %87 : vector<8x1xi1> to vector<8x1xi1>
    %92 = vector.broadcast %91 : vector<8x1xi1> to vector<8x128xi1>
    %93 = arith.select %92, %82, %46 : vector<8x128xi1>, vector<8x128xf32>
    %cst_23 = arith.constant 0.000000e+00 : f32
    %94 = vector.shape_cast %87 : vector<8x1xi1> to vector<8x1xi1>
    %95 = vector.broadcast %94 : vector<8x1xi1> to vector<8x128xi1>
    %96 = vector.broadcast %cst_23 : f32 to vector<8x128xf32>
    %97 = arith.select %95, %84, %96 : vector<8x128xi1>, vector<8x128xf32>
    %98 = arith.index_cast %c1_i32 : i32 to index
    %c0_24 = arith.constant 0 : index
    %c0_25 = arith.constant 0 : index
    %99 = vector.load %arg5[%98, %c0_24, %c0_25] : memref<8x8x128xf32, #tpu.memory_space<vmem>>, vector<1x8x128xf32>
    %100 = vector.shape_cast %99 : vector<1x8x128xf32> to vector<8x128xf32>
    %101 = vector.shape_cast %97 : vector<8x128xf32> to vector<1x8x128xf32>
    tpu.vector_store %arg5[%98, %c0_24, %c0_25], %101 {strides = array<i32>} : memref<8x8x128xf32, #tpu.memory_space<vmem>>, vector<1x8x128xf32>,
    %c2_i32 = arith.constant 2 : i32
    %102 = arith.index_cast %c2_i32 : i32 to index
    %c0_26 = arith.constant 0 : index
    %c0_27 = arith.constant 0 : index
    %103 = vector.load %arg2[%102, %c0_26, %c0_27] : memref<8x8x512xf32, #tpu.memory_space<vmem>>, vector<1x8x512xf32>
    %104 = vector.shape_cast %103 : vector<1x8x512xf32> to vector<8x512xf32>
    %cst_28 = arith.constant dense<0.000000e+00> : vector<8x512xf32>
    %105 = tpu.matmul %90, %4, %cst_28 {dimension_numbers = #tpu.dot_dimension_numbers<[1], [0], [0], [1], [0, 0, 1, 1], [], []>} : vector<8x128xf32>, vector<128x512xf32>, vector<8x512xf32> -> vector<8x512xf32>
    %106 = arith.addf %104, %105 : vector<8x512xf32>
    %107 = vector.extract_strided_slice %106 {offsets = [0, 0], sizes = [8, 128], strides = [1, 1]} : vector<8x512xf32> to vector<8x128xf32>
    %108 = arith.negf %107 : vector<8x128xf32>
    %109 = math.exp %108 : vector<8x128xf32>
    %cst_29 = arith.constant 1.000000e+00 : f32
    %110 = vector.broadcast %cst_29 : f32 to vector<8x128xf32>
    %111 = arith.addf %110, %109 : vector<8x128xf32>
    %112 = arith.divf %110, %111 : vector<8x128xf32>
    %113 = vector.extract_strided_slice %106 {offsets = [0, 128], sizes = [8, 128], strides = [1, 1]} : vector<8x512xf32> to vector<8x128xf32>
    %114 = arith.negf %113 : vector<8x128xf32>
    %115 = math.exp %114 : vector<8x128xf32>
    %cst_30 = arith.constant 1.000000e+00 : f32
    %116 = vector.broadcast %cst_30 : f32 to vector<8x128xf32>
    %117 = arith.addf %116, %115 : vector<8x128xf32>
    %118 = arith.divf %116, %117 : vector<8x128xf32>
    %119 = vector.extract_strided_slice %106 {offsets = [0, 256], sizes = [8, 128], strides = [1, 1]} : vector<8x512xf32> to vector<8x128xf32>
    %120 = math.tanh %119 : vector<8x128xf32>
    %121 = vector.extract_strided_slice %106 {offsets = [0, 384], sizes = [8, 128], strides = [1, 1]} : vector<8x512xf32> to vector<8x128xf32>
    %122 = arith.negf %121 : vector<8x128xf32>
    %123 = math.exp %122 : vector<8x128xf32>
    %cst_31 = arith.constant 1.000000e+00 : f32
    %124 = vector.broadcast %cst_31 : f32 to vector<8x128xf32>
    %125 = arith.addf %124, %123 : vector<8x128xf32>
    %126 = arith.divf %124, %125 : vector<8x128xf32>
    %127 = arith.mulf %118, %93 : vector<8x128xf32>
    %128 = arith.mulf %112, %120 : vector<8x128xf32>
    %129 = arith.addf %127, %128 : vector<8x128xf32>
    %130 = math.tanh %129 : vector<8x128xf32>
    %131 = arith.mulf %126, %130 : vector<8x128xf32>
    %132 = arith.addi %5, %c2_i32 : i32
    %133 = vector.broadcast %132 : i32 to vector<8x1xi32>
    %134 = arith.cmpi sgt, %3, %133 : vector<8x1xi32>
    %135 = vector.shape_cast %134 : vector<8x1xi1> to vector<8x1xi1>
    %136 = vector.broadcast %135 : vector<8x1xi1> to vector<8x128xi1>
    %137 = arith.select %136, %131, %90 : vector<8x128xi1>, vector<8x128xf32>
    %138 = vector.shape_cast %134 : vector<8x1xi1> to vector<8x1xi1>
    %139 = vector.broadcast %138 : vector<8x1xi1> to vector<8x128xi1>
    %140 = arith.select %139, %129, %93 : vector<8x128xi1>, vector<8x128xf32>
    %cst_32 = arith.constant 0.000000e+00 : f32
    %141 = vector.shape_cast %134 : vector<8x1xi1> to vector<8x1xi1>
    %142 = vector.broadcast %141 : vector<8x1xi1> to vector<8x128xi1>
    %143 = vector.broadcast %cst_32 : f32 to vector<8x128xf32>
    %144 = arith.select %142, %131, %143 : vector<8x128xi1>, vector<8x128xf32>
    %145 = arith.index_cast %c2_i32 : i32 to index
    %c0_33 = arith.constant 0 : index
    %c0_34 = arith.constant 0 : index
    %146 = vector.load %arg5[%145, %c0_33, %c0_34] : memref<8x8x128xf32, #tpu.memory_space<vmem>>, vector<1x8x128xf32>
    %147 = vector.shape_cast %146 : vector<1x8x128xf32> to vector<8x128xf32>
    %148 = vector.shape_cast %144 : vector<8x128xf32> to vector<1x8x128xf32>
    tpu.vector_store %arg5[%145, %c0_33, %c0_34], %148 {strides = array<i32>} : memref<8x8x128xf32, #tpu.memory_space<vmem>>, vector<1x8x128xf32>,
    %c3_i32 = arith.constant 3 : i32
    %149 = arith.index_cast %c3_i32 : i32 to index
    %c0_35 = arith.constant 0 : index
    %c0_36 = arith.constant 0 : index
    %150 = vector.load %arg2[%149, %c0_35, %c0_36] : memref<8x8x512xf32, #tpu.memory_space<vmem>>, vector<1x8x512xf32>
    %151 = vector.shape_cast %150 : vector<1x8x512xf32> to vector<8x512xf32>
    %cst_37 = arith.constant dense<0.000000e+00> : vector<8x512xf32>
    %152 = tpu.matmul %137, %4, %cst_37 {dimension_numbers = #tpu.dot_dimension_numbers<[1], [0], [0], [1], [0, 0, 1, 1], [], []>} : vector<8x128xf32>, vector<128x512xf32>, vector<8x512xf32> -> vector<8x512xf32>
    %153 = arith.addf %151, %152 : vector<8x512xf32>
    %154 = vector.extract_strided_slice %153 {offsets = [0, 0], sizes = [8, 128], strides = [1, 1]} : vector<8x512xf32> to vector<8x128xf32>
    %155 = arith.negf %154 : vector<8x128xf32>
    %156 = math.exp %155 : vector<8x128xf32>
    %cst_38 = arith.constant 1.000000e+00 : f32
    %157 = vector.broadcast %cst_38 : f32 to vector<8x128xf32>
    %158 = arith.addf %157, %156 : vector<8x128xf32>
    %159 = arith.divf %157, %158 : vector<8x128xf32>
    %160 = vector.extract_strided_slice %153 {offsets = [0, 128], sizes = [8, 128], strides = [1, 1]} : vector<8x512xf32> to vector<8x128xf32>
    %161 = arith.negf %160 : vector<8x128xf32>
    %162 = math.exp %161 : vector<8x128xf32>
    %cst_39 = arith.constant 1.000000e+00 : f32
    %163 = vector.broadcast %cst_39 : f32 to vector<8x128xf32>
    %164 = arith.addf %163, %162 : vector<8x128xf32>
    %165 = arith.divf %163, %164 : vector<8x128xf32>
    %166 = vector.extract_strided_slice %153 {offsets = [0, 256], sizes = [8, 128], strides = [1, 1]} : vector<8x512xf32> to vector<8x128xf32>
    %167 = math.tanh %166 : vector<8x128xf32>
    %168 = vector.extract_strided_slice %153 {offsets = [0, 384], sizes = [8, 128], strides = [1, 1]} : vector<8x512xf32> to vector<8x128xf32>
    %169 = arith.negf %168 : vector<8x128xf32>
    %170 = math.exp %169 : vector<8x128xf32>
    %cst_40 = arith.constant 1.000000e+00 : f32
    %171 = vector.broadcast %cst_40 : f32 to vector<8x128xf32>
    %172 = arith.addf %171, %170 : vector<8x128xf32>
    %173 = arith.divf %171, %172 : vector<8x128xf32>
    %174 = arith.mulf %165, %140 : vector<8x128xf32>
    %175 = arith.mulf %159, %167 : vector<8x128xf32>
    %176 = arith.addf %174, %175 : vector<8x128xf32>
    %177 = math.tanh %176 : vector<8x128xf32>
    %178 = arith.mulf %173, %177 : vector<8x128xf32>
    %179 = arith.addi %5, %c3_i32 : i32
    %180 = vector.broadcast %179 : i32 to vector<8x1xi32>
    %181 = arith.cmpi sgt, %3, %180 : vector<8x1xi32>
    %182 = vector.shape_cast %181 : vector<8x1xi1> to vector<8x1xi1>
    %183 = vector.broadcast %182 : vector<8x1xi1> to vector<8x128xi1>
    %184 = arith.select %183, %178, %137 : vector<8x128xi1>, vector<8x128xf32>
    %185 = vector.shape_cast %181 : vector<8x1xi1> to vector<8x1xi1>
    %186 = vector.broadcast %185 : vector<8x1xi1> to vector<8x128xi1>
    %187 = arith.select %186, %176, %140 : vector<8x128xi1>, vector<8x128xf32>
    %cst_41 = arith.constant 0.000000e+00 : f32
    %188 = vector.shape_cast %181 : vector<8x1xi1> to vector<8x1xi1>
    %189 = vector.broadcast %188 : vector<8x1xi1> to vector<8x128xi1>
    %190 = vector.broadcast %cst_41 : f32 to vector<8x128xf32>
    %191 = arith.select %189, %178, %190 : vector<8x128xi1>, vector<8x128xf32>
    %192 = arith.index_cast %c3_i32 : i32 to index
    %c0_42 = arith.constant 0 : index
    %c0_43 = arith.constant 0 : index
    %193 = vector.load %arg5[%192, %c0_42, %c0_43] : memref<8x8x128xf32, #tpu.memory_space<vmem>>, vector<1x8x128xf32>
    %194 = vector.shape_cast %193 : vector<1x8x128xf32> to vector<8x128xf32>
    %195 = vector.shape_cast %191 : vector<8x128xf32> to vector<1x8x128xf32>
    tpu.vector_store %arg5[%192, %c0_42, %c0_43], %195 {strides = array<i32>} : memref<8x8x128xf32, #tpu.memory_space<vmem>>, vector<1x8x128xf32>,
    %c4_i32 = arith.constant 4 : i32
    %196 = arith.index_cast %c4_i32 : i32 to index
    %c0_44 = arith.constant 0 : index
    %c0_45 = arith.constant 0 : index
    %197 = vector.load %arg2[%196, %c0_44, %c0_45] : memref<8x8x512xf32, #tpu.memory_space<vmem>>, vector<1x8x512xf32>
    %198 = vector.shape_cast %197 : vector<1x8x512xf32> to vector<8x512xf32>
    %cst_46 = arith.constant dense<0.000000e+00> : vector<8x512xf32>
    %199 = tpu.matmul %184, %4, %cst_46 {dimension_numbers = #tpu.dot_dimension_numbers<[1], [0], [0], [1], [0, 0, 1, 1], [], []>} : vector<8x128xf32>, vector<128x512xf32>, vector<8x512xf32> -> vector<8x512xf32>
    %200 = arith.addf %198, %199 : vector<8x512xf32>
    %201 = vector.extract_strided_slice %200 {offsets = [0, 0], sizes = [8, 128], strides = [1, 1]} : vector<8x512xf32> to vector<8x128xf32>
    %202 = arith.negf %201 : vector<8x128xf32>
    %203 = math.exp %202 : vector<8x128xf32>
    %cst_47 = arith.constant 1.000000e+00 : f32
    %204 = vector.broadcast %cst_47 : f32 to vector<8x128xf32>
    %205 = arith.addf %204, %203 : vector<8x128xf32>
    %206 = arith.divf %204, %205 : vector<8x128xf32>
    %207 = vector.extract_strided_slice %200 {offsets = [0, 128], sizes = [8, 128], strides = [1, 1]} : vector<8x512xf32> to vector<8x128xf32>
    %208 = arith.negf %207 : vector<8x128xf32>
    %209 = math.exp %208 : vector<8x128xf32>
    %cst_48 = arith.constant 1.000000e+00 : f32
    %210 = vector.broadcast %cst_48 : f32 to vector<8x128xf32>
    %211 = arith.addf %210, %209 : vector<8x128xf32>
    %212 = arith.divf %210, %211 : vector<8x128xf32>
    %213 = vector.extract_strided_slice %200 {offsets = [0, 256], sizes = [8, 128], strides = [1, 1]} : vector<8x512xf32> to vector<8x128xf32>
    %214 = math.tanh %213 : vector<8x128xf32>
    %215 = vector.extract_strided_slice %200 {offsets = [0, 384], sizes = [8, 128], strides = [1, 1]} : vector<8x512xf32> to vector<8x128xf32>
    %216 = arith.negf %215 : vector<8x128xf32>
    %217 = math.exp %216 : vector<8x128xf32>
    %cst_49 = arith.constant 1.000000e+00 : f32
    %218 = vector.broadcast %cst_49 : f32 to vector<8x128xf32>
    %219 = arith.addf %218, %217 : vector<8x128xf32>
    %220 = arith.divf %218, %219 : vector<8x128xf32>
    %221 = arith.mulf %212, %187 : vector<8x128xf32>
    %222 = arith.mulf %206, %214 : vector<8x128xf32>
    %223 = arith.addf %221, %222 : vector<8x128xf32>
    %224 = math.tanh %223 : vector<8x128xf32>
    %225 = arith.mulf %220, %224 : vector<8x128xf32>
    %226 = arith.addi %5, %c4_i32 : i32
    %227 = vector.broadcast %226 : i32 to vector<8x1xi32>
    %228 = arith.cmpi sgt, %3, %227 : vector<8x1xi32>
    %229 = vector.shape_cast %228 : vector<8x1xi1> to vector<8x1xi1>
    %230 = vector.broadcast %229 : vector<8x1xi1> to vector<8x128xi1>
    %231 = arith.select %230, %225, %184 : vector<8x128xi1>, vector<8x128xf32>
    %232 = vector.shape_cast %228 : vector<8x1xi1> to vector<8x1xi1>
    %233 = vector.broadcast %232 : vector<8x1xi1> to vector<8x128xi1>
    %234 = arith.select %233, %223, %187 : vector<8x128xi1>, vector<8x128xf32>
    %cst_50 = arith.constant 0.000000e+00 : f32
    %235 = vector.shape_cast %228 : vector<8x1xi1> to vector<8x1xi1>
    %236 = vector.broadcast %235 : vector<8x1xi1> to vector<8x128xi1>
    %237 = vector.broadcast %cst_50 : f32 to vector<8x128xf32>
    %238 = arith.select %236, %225, %237 : vector<8x128xi1>, vector<8x128xf32>
    %239 = arith.index_cast %c4_i32 : i32 to index
    %c0_51 = arith.constant 0 : index
    %c0_52 = arith.constant 0 : index
    %240 = vector.load %arg5[%239, %c0_51, %c0_52] : memref<8x8x128xf32, #tpu.memory_space<vmem>>, vector<1x8x128xf32>
    %241 = vector.shape_cast %240 : vector<1x8x128xf32> to vector<8x128xf32>
    %242 = vector.shape_cast %238 : vector<8x128xf32> to vector<1x8x128xf32>
    tpu.vector_store %arg5[%239, %c0_51, %c0_52], %242 {strides = array<i32>} : memref<8x8x128xf32, #tpu.memory_space<vmem>>, vector<1x8x128xf32>,
    %c5_i32 = arith.constant 5 : i32
    %243 = arith.index_cast %c5_i32 : i32 to index
    %c0_53 = arith.constant 0 : index
    %c0_54 = arith.constant 0 : index
    %244 = vector.load %arg2[%243, %c0_53, %c0_54] : memref<8x8x512xf32, #tpu.memory_space<vmem>>, vector<1x8x512xf32>
    %245 = vector.shape_cast %244 : vector<1x8x512xf32> to vector<8x512xf32>
    %cst_55 = arith.constant dense<0.000000e+00> : vector<8x512xf32>
    %246 = tpu.matmul %231, %4, %cst_55 {dimension_numbers = #tpu.dot_dimension_numbers<[1], [0], [0], [1], [0, 0, 1, 1], [], []>} : vector<8x128xf32>, vector<128x512xf32>, vector<8x512xf32> -> vector<8x512xf32>
    %247 = arith.addf %245, %246 : vector<8x512xf32>
    %248 = vector.extract_strided_slice %247 {offsets = [0, 0], sizes = [8, 128], strides = [1, 1]} : vector<8x512xf32> to vector<8x128xf32>
    %249 = arith.negf %248 : vector<8x128xf32>
    %250 = math.exp %249 : vector<8x128xf32>
    %cst_56 = arith.constant 1.000000e+00 : f32
    %251 = vector.broadcast %cst_56 : f32 to vector<8x128xf32>
    %252 = arith.addf %251, %250 : vector<8x128xf32>
    %253 = arith.divf %251, %252 : vector<8x128xf32>
    %254 = vector.extract_strided_slice %247 {offsets = [0, 128], sizes = [8, 128], strides = [1, 1]} : vector<8x512xf32> to vector<8x128xf32>
    %255 = arith.negf %254 : vector<8x128xf32>
    %256 = math.exp %255 : vector<8x128xf32>
    %cst_57 = arith.constant 1.000000e+00 : f32
    %257 = vector.broadcast %cst_57 : f32 to vector<8x128xf32>
    %258 = arith.addf %257, %256 : vector<8x128xf32>
    %259 = arith.divf %257, %258 : vector<8x128xf32>
    %260 = vector.extract_strided_slice %247 {offsets = [0, 256], sizes = [8, 128], strides = [1, 1]} : vector<8x512xf32> to vector<8x128xf32>
    %261 = math.tanh %260 : vector<8x128xf32>
    %262 = vector.extract_strided_slice %247 {offsets = [0, 384], sizes = [8, 128], strides = [1, 1]} : vector<8x512xf32> to vector<8x128xf32>
    %263 = arith.negf %262 : vector<8x128xf32>
    %264 = math.exp %263 : vector<8x128xf32>
    %cst_58 = arith.constant 1.000000e+00 : f32
    %265 = vector.broadcast %cst_58 : f32 to vector<8x128xf32>
    %266 = arith.addf %265, %264 : vector<8x128xf32>
    %267 = arith.divf %265, %266 : vector<8x128xf32>
    %268 = arith.mulf %259, %234 : vector<8x128xf32>
    %269 = arith.mulf %253, %261 : vector<8x128xf32>
    %270 = arith.addf %268, %269 : vector<8x128xf32>
    %271 = math.tanh %270 : vector<8x128xf32>
    %272 = arith.mulf %267, %271 : vector<8x128xf32>
    %273 = arith.addi %5, %c5_i32 : i32
    %274 = vector.broadcast %273 : i32 to vector<8x1xi32>
    %275 = arith.cmpi sgt, %3, %274 : vector<8x1xi32>
    %276 = vector.shape_cast %275 : vector<8x1xi1> to vector<8x1xi1>
    %277 = vector.broadcast %276 : vector<8x1xi1> to vector<8x128xi1>
    %278 = arith.select %277, %272, %231 : vector<8x128xi1>, vector<8x128xf32>
    %279 = vector.shape_cast %275 : vector<8x1xi1> to vector<8x1xi1>
    %280 = vector.broadcast %279 : vector<8x1xi1> to vector<8x128xi1>
    %281 = arith.select %280, %270, %234 : vector<8x128xi1>, vector<8x128xf32>
    %cst_59 = arith.constant 0.000000e+00 : f32
    %282 = vector.shape_cast %275 : vector<8x1xi1> to vector<8x1xi1>
    %283 = vector.broadcast %282 : vector<8x1xi1> to vector<8x128xi1>
    %284 = vector.broadcast %cst_59 : f32 to vector<8x128xf32>
    %285 = arith.select %283, %272, %284 : vector<8x128xi1>, vector<8x128xf32>
    %286 = arith.index_cast %c5_i32 : i32 to index
    %c0_60 = arith.constant 0 : index
    %c0_61 = arith.constant 0 : index
    %287 = vector.load %arg5[%286, %c0_60, %c0_61] : memref<8x8x128xf32, #tpu.memory_space<vmem>>, vector<1x8x128xf32>
    %288 = vector.shape_cast %287 : vector<1x8x128xf32> to vector<8x128xf32>
    %289 = vector.shape_cast %285 : vector<8x128xf32> to vector<1x8x128xf32>
    tpu.vector_store %arg5[%286, %c0_60, %c0_61], %289 {strides = array<i32>} : memref<8x8x128xf32, #tpu.memory_space<vmem>>, vector<1x8x128xf32>,
    %c6_i32 = arith.constant 6 : i32
    %290 = arith.index_cast %c6_i32 : i32 to index
    %c0_62 = arith.constant 0 : index
    %c0_63 = arith.constant 0 : index
    %291 = vector.load %arg2[%290, %c0_62, %c0_63] : memref<8x8x512xf32, #tpu.memory_space<vmem>>, vector<1x8x512xf32>
    %292 = vector.shape_cast %291 : vector<1x8x512xf32> to vector<8x512xf32>
    %cst_64 = arith.constant dense<0.000000e+00> : vector<8x512xf32>
    %293 = tpu.matmul %278, %4, %cst_64 {dimension_numbers = #tpu.dot_dimension_numbers<[1], [0], [0], [1], [0, 0, 1, 1], [], []>} : vector<8x128xf32>, vector<128x512xf32>, vector<8x512xf32> -> vector<8x512xf32>
    %294 = arith.addf %292, %293 : vector<8x512xf32>
    %295 = vector.extract_strided_slice %294 {offsets = [0, 0], sizes = [8, 128], strides = [1, 1]} : vector<8x512xf32> to vector<8x128xf32>
    %296 = arith.negf %295 : vector<8x128xf32>
    %297 = math.exp %296 : vector<8x128xf32>
    %cst_65 = arith.constant 1.000000e+00 : f32
    %298 = vector.broadcast %cst_65 : f32 to vector<8x128xf32>
    %299 = arith.addf %298, %297 : vector<8x128xf32>
    %300 = arith.divf %298, %299 : vector<8x128xf32>
    %301 = vector.extract_strided_slice %294 {offsets = [0, 128], sizes = [8, 128], strides = [1, 1]} : vector<8x512xf32> to vector<8x128xf32>
    %302 = arith.negf %301 : vector<8x128xf32>
    %303 = math.exp %302 : vector<8x128xf32>
    %cst_66 = arith.constant 1.000000e+00 : f32
    %304 = vector.broadcast %cst_66 : f32 to vector<8x128xf32>
    %305 = arith.addf %304, %303 : vector<8x128xf32>
    %306 = arith.divf %304, %305 : vector<8x128xf32>
    %307 = vector.extract_strided_slice %294 {offsets = [0, 256], sizes = [8, 128], strides = [1, 1]} : vector<8x512xf32> to vector<8x128xf32>
    %308 = math.tanh %307 : vector<8x128xf32>
    %309 = vector.extract_strided_slice %294 {offsets = [0, 384], sizes = [8, 128], strides = [1, 1]} : vector<8x512xf32> to vector<8x128xf32>
    %310 = arith.negf %309 : vector<8x128xf32>
    %311 = math.exp %310 : vector<8x128xf32>
    %cst_67 = arith.constant 1.000000e+00 : f32
    %312 = vector.broadcast %cst_67 : f32 to vector<8x128xf32>
    %313 = arith.addf %312, %311 : vector<8x128xf32>
    %314 = arith.divf %312, %313 : vector<8x128xf32>
    %315 = arith.mulf %306, %281 : vector<8x128xf32>
    %316 = arith.mulf %300, %308 : vector<8x128xf32>
    %317 = arith.addf %315, %316 : vector<8x128xf32>
    %318 = math.tanh %317 : vector<8x128xf32>
    %319 = arith.mulf %314, %318 : vector<8x128xf32>
    %320 = arith.addi %5, %c6_i32 : i32
    %321 = vector.broadcast %320 : i32 to vector<8x1xi32>
    %322 = arith.cmpi sgt, %3, %321 : vector<8x1xi32>
    %323 = vector.shape_cast %322 : vector<8x1xi1> to vector<8x1xi1>
    %324 = vector.broadcast %323 : vector<8x1xi1> to vector<8x128xi1>
    %325 = arith.select %324, %319, %278 : vector<8x128xi1>, vector<8x128xf32>
    %326 = vector.shape_cast %322 : vector<8x1xi1> to vector<8x1xi1>
    %327 = vector.broadcast %326 : vector<8x1xi1> to vector<8x128xi1>
    %328 = arith.select %327, %317, %281 : vector<8x128xi1>, vector<8x128xf32>
    %cst_68 = arith.constant 0.000000e+00 : f32
    %329 = vector.shape_cast %322 : vector<8x1xi1> to vector<8x1xi1>
    %330 = vector.broadcast %329 : vector<8x1xi1> to vector<8x128xi1>
    %331 = vector.broadcast %cst_68 : f32 to vector<8x128xf32>
    %332 = arith.select %330, %319, %331 : vector<8x128xi1>, vector<8x128xf32>
    %333 = arith.index_cast %c6_i32 : i32 to index
    %c0_69 = arith.constant 0 : index
    %c0_70 = arith.constant 0 : index
    %334 = vector.load %arg5[%333, %c0_69, %c0_70] : memref<8x8x128xf32, #tpu.memory_space<vmem>>, vector<1x8x128xf32>
    %335 = vector.shape_cast %334 : vector<1x8x128xf32> to vector<8x128xf32>
    %336 = vector.shape_cast %332 : vector<8x128xf32> to vector<1x8x128xf32>
    tpu.vector_store %arg5[%333, %c0_69, %c0_70], %336 {strides = array<i32>} : memref<8x8x128xf32, #tpu.memory_space<vmem>>, vector<1x8x128xf32>,
    %c7_i32 = arith.constant 7 : i32
    %337 = arith.index_cast %c7_i32 : i32 to index
    %c0_71 = arith.constant 0 : index
    %c0_72 = arith.constant 0 : index
    %338 = vector.load %arg2[%337, %c0_71, %c0_72] : memref<8x8x512xf32, #tpu.memory_space<vmem>>, vector<1x8x512xf32>
    %339 = vector.shape_cast %338 : vector<1x8x512xf32> to vector<8x512xf32>
    %cst_73 = arith.constant dense<0.000000e+00> : vector<8x512xf32>
    %340 = tpu.matmul %325, %4, %cst_73 {dimension_numbers = #tpu.dot_dimension_numbers<[1], [0], [0], [1], [0, 0, 1, 1], [], []>} : vector<8x128xf32>, vector<128x512xf32>, vector<8x512xf32> -> vector<8x512xf32>
    %341 = arith.addf %339, %340 : vector<8x512xf32>
    %342 = vector.extract_strided_slice %341 {offsets = [0, 0], sizes = [8, 128], strides = [1, 1]} : vector<8x512xf32> to vector<8x128xf32>
    %343 = arith.negf %342 : vector<8x128xf32>
    %344 = math.exp %343 : vector<8x128xf32>
    %cst_74 = arith.constant 1.000000e+00 : f32
    %345 = vector.broadcast %cst_74 : f32 to vector<8x128xf32>
    %346 = arith.addf %345, %344 : vector<8x128xf32>
    %347 = arith.divf %345, %346 : vector<8x128xf32>
    %348 = vector.extract_strided_slice %341 {offsets = [0, 128], sizes = [8, 128], strides = [1, 1]} : vector<8x512xf32> to vector<8x128xf32>
    %349 = arith.negf %348 : vector<8x128xf32>
    %350 = math.exp %349 : vector<8x128xf32>
    %cst_75 = arith.constant 1.000000e+00 : f32
    %351 = vector.broadcast %cst_75 : f32 to vector<8x128xf32>
    %352 = arith.addf %351, %350 : vector<8x128xf32>
    %353 = arith.divf %351, %352 : vector<8x128xf32>
    %354 = vector.extract_strided_slice %341 {offsets = [0, 256], sizes = [8, 128], strides = [1, 1]} : vector<8x512xf32> to vector<8x128xf32>
    %355 = math.tanh %354 : vector<8x128xf32>
    %356 = vector.extract_strided_slice %341 {offsets = [0, 384], sizes = [8, 128], strides = [1, 1]} : vector<8x512xf32> to vector<8x128xf32>
    %357 = arith.negf %356 : vector<8x128xf32>
    %358 = math.exp %357 : vector<8x128xf32>
    %cst_76 = arith.constant 1.000000e+00 : f32
    %359 = vector.broadcast %cst_76 : f32 to vector<8x128xf32>
    %360 = arith.addf %359, %358 : vector<8x128xf32>
    %361 = arith.divf %359, %360 : vector<8x128xf32>
    %362 = arith.mulf %353, %328 : vector<8x128xf32>
    %363 = arith.mulf %347, %355 : vector<8x128xf32>
    %364 = arith.addf %362, %363 : vector<8x128xf32>
    %365 = math.tanh %364 : vector<8x128xf32>
    %366 = arith.mulf %361, %365 : vector<8x128xf32>
    %367 = arith.addi %5, %c7_i32 : i32
    %368 = vector.broadcast %367 : i32 to vector<8x1xi32>
    %369 = arith.cmpi sgt, %3, %368 : vector<8x1xi32>
    %370 = vector.shape_cast %369 : vector<8x1xi1> to vector<8x1xi1>
    %371 = vector.broadcast %370 : vector<8x1xi1> to vector<8x128xi1>
    %372 = arith.select %371, %366, %325 : vector<8x128xi1>, vector<8x128xf32>
    %373 = vector.shape_cast %369 : vector<8x1xi1> to vector<8x1xi1>
    %374 = vector.broadcast %373 : vector<8x1xi1> to vector<8x128xi1>
    %375 = arith.select %374, %364, %328 : vector<8x128xi1>, vector<8x128xf32>
    %cst_77 = arith.constant 0.000000e+00 : f32
    %376 = vector.shape_cast %369 : vector<8x1xi1> to vector<8x1xi1>
    %377 = vector.broadcast %376 : vector<8x1xi1> to vector<8x128xi1>
    %378 = vector.broadcast %cst_77 : f32 to vector<8x128xf32>
    %379 = arith.select %377, %366, %378 : vector<8x128xi1>, vector<8x128xf32>
    %380 = arith.index_cast %c7_i32 : i32 to index
    %c0_78 = arith.constant 0 : index
    %c0_79 = arith.constant 0 : index
    %381 = vector.load %arg5[%380, %c0_78, %c0_79] : memref<8x8x128xf32, #tpu.memory_space<vmem>>, vector<1x8x128xf32>
    %382 = vector.shape_cast %381 : vector<1x8x128xf32> to vector<8x128xf32>
    %383 = vector.shape_cast %379 : vector<8x128xf32> to vector<1x8x128xf32>
    tpu.vector_store %arg5[%380, %c0_78, %c0_79], %383 {strides = array<i32>} : memref<8x8x128xf32, #tpu.memory_space<vmem>>, vector<1x8x128xf32>,
    %c8_i32_80 = arith.constant 8 : i32
    %c0_81 = arith.constant 0 : index
    %c0_82 = arith.constant 0 : index
    %384 = vector.load %arg6[%c0_81, %c0_82] : memref<8x128xf32, #tpu.memory_space<vmem>>, vector<8x128xf32>
    tpu.vector_store %arg6[%c0_81, %c0_82], %372 {strides = array<i32>} : memref<8x128xf32, #tpu.memory_space<vmem>>, vector<8x128xf32>,
    %c0_83 = arith.constant 0 : index
    %c0_84 = arith.constant 0 : index
    %385 = vector.load %arg7[%c0_83, %c0_84] : memref<8x128xf32, #tpu.memory_space<vmem>>, vector<8x128xf32>
    tpu.vector_store %arg7[%c0_83, %c0_84], %375 {strides = array<i32>} : memref<8x128xf32, #tpu.memory_space<vmem>>, vector<8x128xf32>,
    return
  }
  func.func @transform_0(%arg0: i32, %arg1: i32) -> (i32, i32, i32) {
    %c0_i32 = arith.constant 0 : i32
    %c0_i32_0 = arith.constant 0 : i32
    return %arg1, %arg0, %c0_i32 : i32, i32, i32
  }
  func.func @transform_1(%arg0: i32, %arg1: i32) -> (i32, i32) {
    %c0_i32 = arith.constant 0 : i32
    %c0_i32_0 = arith.constant 0 : i32
    return %arg0, %c0_i32 : i32, i32
  }
  func.func @transform_2(%arg0: i32, %arg1: i32) -> (i32, i32) {
    %c0_i32 = arith.constant 0 : i32
    %c0_i32_0 = arith.constant 0 : i32
    %c0_i32_1 = arith.constant 0 : i32
    return %c0_i32, %c0_i32_0 : i32, i32
  }
  func.func @transform_3(%arg0: i32, %arg1: i32) -> (i32, i32, i32) {
    %c0_i32 = arith.constant 0 : i32
    %c0_i32_0 = arith.constant 0 : i32
    return %arg1, %arg0, %c0_i32 : i32, i32, i32
  }
  func.func @transform_4(%arg0: i32, %arg1: i32) -> (i32, i32) {
    %c0_i32 = arith.constant 0 : i32
    %c0_i32_0 = arith.constant 0 : i32
    return %arg0, %c0_i32 : i32, i32
  }
  func.func @transform_5(%arg0: i32, %arg1: i32) -> (i32, i32) {
    %c0_i32 = arith.constant 0 : i32
    %c0_i32_0 = arith.constant 0 : i32
    return %arg0, %c0_i32 : i32, i32
  }
}

</mosaic_0001>

<llo_original>
// kernel: tpu_custom_call.1
$region0: #{tpu_custom_call.1}
  #allocation0 [shape = 'u32[]', space=smem, size = 0x4, offset = 0x4, fixed_abs, tag = 'smem constant byte address 0x4 - core index']
  #allocation1 [shape = 'u32[144,128]{1,0:T(1,128)}', space=vmem, size = 0x12000, scoped, tag = 'internal scratch']
  %s0 = inlined_call_operand.hbm [shape: f32[16,8,512], index: 0, kind: input, shape index: {}]
  %s1 = inlined_call_operand.vmem [shape: s32[8,1], index: 1, kind: input, shape index: {}]
  %s2 = inlined_call_operand.hbm [shape: f32[128,512], index: 2, kind: input, shape index: {}]
  %s3 = inlined_call_operand.hbm [shape: f32[16,8,128], index: 3, kind: output, shape index: {0}]
  %s4 = inlined_call_operand.hbm [shape: f32[8,128], index: 4, kind: output, shape index: {1}]
  %s5 = inlined_call_operand.hbm [shape: f32[8,128], index: 5, kind: output, shape index: {2}]
  %6 = xla_tuple %s3, %s4, %s5
  %s7 = sld [smem:[#allocation0]]
  $region73: #{tpu_custom_call.1} parent=0
    _
  %s9 = ssub.s32 1, %s7
  %s10 = scalar_select 0, %s9, %s7
  $region1: #{tpu_custom_call.1} parent=0
    #allocation2 [shape = 'u8[262144]{0}', space=vmem, size = 0x40000, scoped, tag = 'input window, operand 0']
    #allocation3 [shape = 's32[2]{0}', space=sflag, size = 0x8, scoped, tag = 'scoped memory for tpu_custom_call.1']
    #allocation4 [shape = 's32[2]{0}', space=sflag, size = 0x8, scoped, tag = 'scoped memory for tpu_custom_call.1']
    #allocation5 [shape = 'u8[262144]{0}', space=vmem, size = 0x40000, scoped, tag = 'input window, operand 2, single buffered']
    #allocation6 [shape = 's32[1]{0}', space=sflag, size = 0x4, scoped, tag = 'scoped memory for tpu_custom_call.1']
    #allocation7 [shape = 'u8[65536]{0}', space=vmem, size = 0x10000, scoped, tag = 'output window, operand 0']
    #allocation8 [shape = 'u8[4096]{0}', space=vmem, size = 0x1000, scoped, tag = 'output window, operand 1, single buffered']
    #allocation9 [shape = 's32[1]{0}', space=sflag, size = 0x4, scoped, tag = 'scoped memory for tpu_custom_call.1']
    #allocation10 [shape = 'u8[4096]{0}', space=vmem, size = 0x1000, scoped, tag = 'output window, operand 2, single buffered']
    %11 = vsyncpa [#allocation3], 0
    %s12 = scalar_lea.sflag [#allocation3], 1
    %13 = vsyncpa %s12, 0
    %14 = vsyncpa [#allocation6], 0
    %15 = vsyncpa [#allocation4], 0
    %s16 = scalar_lea.sflag [#allocation4], 1
    %17 = vsyncpa %s16, 0
    %18 = vsyncpa [#allocation9], 0
    loop: start=0, step=1, limit=4
    $region2: #{tpu_custom_call.1} parent=1 // loop_pre_header
      _
    $region3: #{tpu_custom_call.1} parent=1 // loop_header
      %s20 = sphi 0, %s24
      %p21 = scmp.ge.s32.totalorder %s20, 4
      %s27 = sphi 0, %s39
      %s28 = sphi 0, %s35
      %s29 = sphi 0, %s27
      %s30 = sphi 0, %s28
      %s31 = sphi 0, %s29
      %s32 = sphi 0, %s30
      %s44 = sphi 0, %s46
      %s47 = sphi 0, %s44
      %s48 = sphi 0, %s47
      %s64 = sphi 0, %s48
      %s70 = sphi 0, %s72
      %s73 = sphi 0, %s70
      %s74 = sphi 0, %s73
      %s90 = sphi 0, %s74
      %s94 = sphi 0, %s94
      %s96 = sphi 0, %s94
      %s97 = sphi 0, %s96
      %s111 = sphi 0, %s97
      %s119 = sphi 0, %s121
      %s122 = sphi 0, %s119
      %s123 = sphi 0, %s122
      %s139 = sphi 0, %s123
      %s145 = sphi 0, %s147
      %s148 = sphi 0, %s145
      %s149 = sphi 0, %s148
      %s165 = sphi 0, %s149
      %s171 = sphi 0, %s173
      %s174 = sphi 0, %s171
      %s175 = sphi 0, %s174
      %s191 = sphi 0, %s175
    $region4: #{tpu_custom_call.1} parent=1 // loop_header_branch
      %23 = sbr.rel (%p21) target = $region8
    $region5: #{tpu_custom_call.1} parent=1 // loop_body
      %s25 = ssub.s32 %s20, 1
      %s26 = ssub.s32 %s20, 2
      %s33 = sadd.s32 1, %s28
      %p34 = scmp.ge.s32.totalorder %s33, 2
      %s35 = scalar_select %p34, 0, %s33
      %s36 = sadd.s32 1, %s27
      %s37 = scalar_select %p34, %s36, %s27
      %p38 = scmp.ge.s32.totalorder %s37, 1
      %s39 = scalar_select %p38, 0, %s37
      %s40 = ssub.s32 %s28, %s35
      %s41 = ssub.s32 %s27, %s39
      %s42 = sor.u32 %s40, %s41
      %p43 = scmp.eq.s32.totalorder %s42, 0
      %s45 = sadd.s32 %s44, 1
      %s46 = scalar_select %p43, %s44, %s45
      %p49 = pneg %p43
      %p50 = scmp.eq.s32.totalorder %s20, 1
      %p51 = por %p49, %p50
      %p52 = scmp.ne.s32.totalorder %s44, %s47
      %p53 = scmp.eq.s32.totalorder %s20, 0
      %p54 = por %p52, %p53
      %p55 = scmp.ne.s32.totalorder %s44, %s47
      %p56 = scmp.eq.s32.totalorder %s25, 1
      %p57 = por %p55, %p56
      %p58 = scmp.ne.s32.totalorder %s47, %s48
      %p59 = scmp.eq.s32.totalorder %s25, 0
      %p60 = por %p58, %p59
      %p61 = scmp.ne.s32.totalorder %s47, %s48
      %p62 = scmp.eq.s32.totalorder %s26, 1
      %p63 = por %p61, %p62
      %p65 = scmp.ne.s32.totalorder %s48, %s64
      %p66 = scmp.eq.s32.totalorder %s26, 0
      %p67 = por %p65, %p66
      %s68 = ssub.s32 %s27, %s39
      %p69 = scmp.eq.s32.totalorder %s68, 0
      %s71 = sadd.s32 %s70, 1
      %s72 = scalar_select %p69, %s70, %s71
      %p75 = pneg %p69
      %p76 = scmp.eq.s32.totalorder %s20, 1
      %p77 = por %p75, %p76
      %p78 = scmp.ne.s32.totalorder %s70, %s73
      %p79 = scmp.eq.s32.totalorder %s20, 0
      %p80 = por %p78, %p79
      %p81 = scmp.ne.s32.totalorder %s70, %s73
      %p82 = scmp.eq.s32.totalorder %s25, 1
      %p83 = por %p81, %p82
      %p84 = scmp.ne.s32.totalorder %s73, %s74
      %p85 = scmp.eq.s32.totalorder %s25, 0
      %p86 = por %p84, %p85
      %p87 = scmp.ne.s32.totalorder %s73, %s74
      %p88 = scmp.eq.s32.totalorder %s26, 1
      %p89 = por %p87, %p88
      %p91 = scmp.ne.s32.totalorder %s74, %s90
      %p92 = scmp.eq.s32.totalorder %s26, 0
      %p93 = por %p91, %p92
      %s95 = sadd.s32 %s94, 1
      %p98 = scmp.eq.s32.totalorder %s20, 1
      %p99 = scmp.ne.s32.totalorder %s94, %s96
      %p100 = scmp.eq.s32.totalorder %s20, 0
      %p101 = por %p99, %p100
      %p102 = scmp.ne.s32.totalorder %s94, %s96
      %p103 = scmp.eq.s32.totalorder %s25, 1
      %p104 = por %p102, %p103
      %p105 = scmp.ne.s32.totalorder %s96, %s97
      %p106 = scmp.eq.s32.totalorder %s25, 0
      %p107 = por %p105, %p106
      %p108 = scmp.ne.s32.totalorder %s96, %s97
      %p109 = scmp.eq.s32.totalorder %s26, 1
      %p110 = por %p108, %p109
      %p112 = scmp.ne.s32.totalorder %s97, %s111
      %p113 = scmp.eq.s32.totalorder %s26, 0
      %p114 = por %p112, %p113
      %s115 = ssub.s32 %s28, %s35
      %s116 = ssub.s32 %s27, %s39
      %s117 = sor.u32 %s115, %s116
      %p118 = scmp.eq.s32.totalorder %s117, 0
      %s120 = sadd.s32 %s119, 1
      %s121 = scalar_select %p118, %s119, %s120
      %p124 = pneg %p118
      %p125 = scmp.eq.s32.totalorder %s20, 1
      %p126 = por %p124, %p125
      %p127 = scmp.ne.s32.totalorder %s119, %s122
      %p128 = scmp.eq.s32.totalorder %s20, 0
      %p129 = por %p127, %p128
      %p130 = scmp.ne.s32.totalorder %s119, %s122
      %p131 = scmp.eq.s32.totalorder %s25, 1
      %p132 = por %p130, %p131
      %p133 = scmp.ne.s32.totalorder %s122, %s123
      %p134 = scmp.eq.s32.totalorder %s25, 0
      %p135 = por %p133, %p134
      %p136 = scmp.ne.s32.totalorder %s122, %s123
      %p137 = scmp.eq.s32.totalorder %s26, 1
      %p138 = por %p136, %p137
      %p140 = scmp.ne.s32.totalorder %s123, %s139
      %p141 = scmp.eq.s32.totalorder %s26, 0
      %p142 = por %p140, %p141
      %s143 = ssub.s32 %s27, %s39
      %p144 = scmp.eq.s32.totalorder %s143, 0
      %s146 = sadd.s32 %s145, 1
      %s147 = scalar_select %p144, %s145, %s146
      %p150 = pneg %p144
      %p151 = scmp.eq.s32.totalorder %s20, 1
      %p152 = por %p150, %p151
      %p153 = scmp.ne.s32.totalorder %s145, %s148
      %p154 = scmp.eq.s32.totalorder %s20, 0
      %p155 = por %p153, %p154
      %p156 = scmp.ne.s32.totalorder %s145, %s148
      %p157 = scmp.eq.s32.totalorder %s25, 1
      %p158 = por %p156, %p157
      %p159 = scmp.ne.s32.totalorder %s148, %s149
      %p160 = scmp.eq.s32.totalorder %s25, 0
      %p161 = por %p159, %p160
      %p162 = scmp.ne.s32.totalorder %s148, %s149
      %p163 = scmp.eq.s32.totalorder %s26, 1
      %p164 = por %p162, %p163
      %p166 = scmp.ne.s32.totalorder %s149, %s165
      %p167 = scmp.eq.s32.totalorder %s26, 0
      %p168 = por %p166, %p167
      %s169 = ssub.s32 %s27, %s39
      %p170 = scmp.eq.s32.totalorder %s169, 0
      %s172 = sadd.s32 %s171, 1
      %s173 = scalar_select %p170, %s171, %s172
      %p176 = pneg %p170
      %p177 = scmp.eq.s32.totalorder %s20, 1
      %p178 = por %p176, %p177
      %p179 = scmp.ne.s32.totalorder %s171, %s174
      %p180 = scmp.eq.s32.totalorder %s20, 0
      %p181 = por %p179, %p180
      %p182 = scmp.ne.s32.totalorder %s171, %s174
      %p183 = scmp.eq.s32.totalorder %s25, 1
      %p184 = por %p182, %p183
      %p185 = scmp.ne.s32.totalorder %s174, %s175
      %p186 = scmp.eq.s32.totalorder %s25, 0
      %p187 = por %p185, %p186
      %p188 = scmp.ne.s32.totalorder %s174, %s175
      %p189 = scmp.eq.s32.totalorder %s26, 1
      %p190 = por %p188, %p189
      %p192 = scmp.ne.s32.totalorder %s175, %s191
      %p193 = scmp.eq.s32.totalorder %s26, 0
      %p194 = por %p192, %p193
      %p195 = scmp.le.s32.totalorder 1, %s20
      %p196 = scmp.lt.s32.totalorder %s20, 3
      %p197 = pnand %p195, %p196
      %p198 = pneg %p197
      // Predicated region
      $region9: #{tpu_custom_call.1} parent=5 // pred_check
        _
      $region10: #{tpu_custom_call.1} parent=5 // pred_check_branch
        %200 = sbr.rel (%p197) target = $region12
      $region11: #{tpu_custom_call.1} parent=5 // pred_region
        %s201 = ssub.s32 %s20, 1
        // Predicated region
        $region13: #{tpu_custom_call.1} parent=11 // pred_check
          %p202 = pneg %p86
        $region14: #{tpu_custom_call.1} parent=11 // pred_check_branch
          %204 = sbr.rel (%p202) target = $region16
        $region15: #{tpu_custom_call.1} parent=11 // pred_region
          %p205 = scmp.lt.s32.totalorder %s29, 0
          %s206 = scalar_select %p205, %s29, 0
          %s207 = smul.addr %s206, 8
          %s208 = scalar_lea.vmem %s1, %s207
        $region16: #{tpu_custom_call.1} parent=11 // pred_fallthru
          _
        // Predicated region
        $region17: #{tpu_custom_call.1} parent=11 // pred_check
          %p209 = pneg %p107
        $region18: #{tpu_custom_call.1} parent=11 // pred_check_branch
          %211 = sbr.rel (%p209) target = $region20
        $region19: #{tpu_custom_call.1} parent=11 // pred_region
          %s213 = ssub.s32 8192, 8192
          %214 = vsyncadd [#allocation6], %s213
          %s215 = sshll.u32 [#allocation5], 4
          %s216 = int_to_ptr.vmem [resolvable:$true] %s215
          %221 = dma.hbm_to_vmem [thread:$0]  %s2, 8192, %s216, [#allocation6], 512, 512, 32
        $region20: #{tpu_custom_call.1} parent=11 // pred_fallthru
          _
      $region12: #{tpu_custom_call.1} parent=5 // pred_fallthru
        _
      %p222 = scmp.lt.s32.totalorder %s20, 2
      // Predicated region
      $region21: #{tpu_custom_call.1} parent=5 // pred_check
        %p223 = pneg %p222
      $region22: #{tpu_custom_call.1} parent=5 // pred_check_branch
        %225 = sbr.rel (%p223) target = $region24
      $region23: #{tpu_custom_call.1} parent=5 // pred_region
        // Predicated region
        $region25: #{tpu_custom_call.1} parent=23 // pred_check
          %p226 = pneg %p54
        $region26: #{tpu_custom_call.1} parent=23 // pred_check_branch
          %228 = sbr.rel (%p226) target = $region28
        $region27: #{tpu_custom_call.1} parent=23 // pred_region
          %s229 = sand.u32 %s44, 1
          %s230 = scalar_lea.sflag [#allocation3], %s229
          %s231 = sand.u32 %s44, 1
          %s232 = smul.addr %s231, 256
          %s233 = scalar_lea.vmem [#allocation2], %s232
          %s234 = smul.u32 8, %s28
          %s236 = ssub.s32 4096, 4096
          %237 = vsyncadd %s230, %s236
          %s238 = smul.addr %s27, 4
          %s239 = smul.addr %s234, 4
          %s240 = sadd.s32 %s238, %s239
          %s241 = smul.addr %s240, 128
          %s242 = scalar_lea.hbm %s0, %s241
          %s243 = sshll.u32 %s233, 4
          %s244 = int_to_ptr.vmem [resolvable:$true] %s243
          %249 = dma.hbm_to_vmem [thread:$0]  %s242, 4096, %s244, %s230, 512, 512, 32
        $region28: #{tpu_custom_call.1} parent=23 // pred_fallthru
          _
      $region24: #{tpu_custom_call.1} parent=5 // pred_fallthru
        _
      %p250 = scmp.le.s32.totalorder 1, %s20
      %p251 = scmp.lt.s32.totalorder %s20, 3
      %p252 = pnand %p250, %p251
      %p253 = pneg %p252
      // Predicated region
      $region29: #{tpu_custom_call.1} parent=5 // pred_check
        _
      $region30: #{tpu_custom_call.1} parent=5 // pred_check_branch
        %255 = sbr.rel (%p252) target = $region32
      $region31: #{tpu_custom_call.1} parent=5 // pred_region
        %s256 = ssub.s32 %s20, 1
        %s257 = sand.u32 %s47, 1
        %s258 = scalar_lea.sflag [#allocation3], %s257
        %s259 = sand.u32 %s47, 1
        %s260 = smul.addr %s259, 256
        %s261 = scalar_lea.vmem [#allocation2], %s260
        // Predicated region
        $region33: #{tpu_custom_call.1} parent=31 // pred_check
          %p262 = pneg %p60
        $region34: #{tpu_custom_call.1} parent=31 // pred_check_branch
          %264 = sbr.rel (%p262) target = $region36
        $region35: #{tpu_custom_call.1} parent=31 // pred_region
          %265 = dma.done %s258, 4096
        $region36: #{tpu_custom_call.1} parent=31 // pred_fallthru
          _
        // Predicated region
        $region37: #{tpu_custom_call.1} parent=31 // pred_check
          %p266 = pneg %p107
        $region38: #{tpu_custom_call.1} parent=31 // pred_check_branch
          %268 = sbr.rel (%p266) target = $region40
        $region39: #{tpu_custom_call.1} parent=31 // pred_region
          %269 = dma.done [#allocation6], 8192
        $region40: #{tpu_custom_call.1} parent=31 // pred_fallthru
          _
        %s270 = sand.u32 %s47, 1
        %s271 = scalar_lea.sflag [#allocation3], %s270
        %s272 = sand.u32 %s47, 1
        %s273 = smul.addr %s272, 256
        %s274 = scalar_lea.vmem [#allocation2], %s273
        %p275 = pneg %p60
        %p276 = pneg %p57
        %p277 = scmp.lt.s32.totalorder %s29, 0
        %s278 = scalar_select %p277, %s29, 0
        %s279 = smul.addr %s278, 8
        %s280 = scalar_lea.vmem %s1, %s279
        %p281 = pneg %p86
        %p282 = pneg %p83
        %p283 = pneg %p107
        %p284 = pneg %p104
        %p285 = pneg %p135
        %p286 = pneg %p132
        %s287 = sand.u32 %s122, 1
        %s288 = scalar_lea.sflag [#allocation4], %s287
        %s289 = sand.u32 %s122, 1
        %s290 = smul.addr %s289, 64
        %s291 = scalar_lea.vmem [#allocation7], %s290
        %p292 = pneg %p161
        %p293 = pneg %p158
        %p294 = pneg %p187
        %p295 = pneg %p184
        %s296 = smul.u32 8, %s30
        %p297 = scmp.lt.s32.totalorder %s29, 0
        %s298 = scalar_select %p297, %s29, 0
        %s299 = smul.addr %s298, 8
        %s300 = scalar_lea.vmem %s1, %s299
        %s301 = smul.u32 8, %s30
        %p302 = scmp.eq.s32.totalorder %s30, 0
        // Predicated region
        $region41: #{tpu_custom_call.1} parent=31 // pred_check
          %p303 = pneg %p302
        $region42: #{tpu_custom_call.1} parent=31 // pred_check_branch
          %305 = sbr.rel (%p303) target = $region44
        $region43: #{tpu_custom_call.1} parent=31 // pred_region
          %306 = vst [vmem:[#allocation8] sm:$0xff] 0.0
          %307 = vst [vmem:[#allocation10] sm:$0xff] 0.0
        $region44: #{tpu_custom_call.1} parent=31 // pred_fallthru
          _
        %v308 = vld [vmem:[%s300] sm:$0xff]
        %v309 = vld [vmem:[#allocation5] sm:$0xff]
        %v310 = vld [vmem:[#allocation5 + $0x8] sm:$0xff]
        %v311 = vld [vmem:[#allocation5 + $0x10] sm:$0xff]
        %v312 = vld [vmem:[#allocation5 + $0x18] sm:$0xff]
        %v313 = vld [vmem:[#allocation5 + $0x20] sm:$0xff]
        %v314 = vld [vmem:[#allocation5 + $0x28] sm:$0xff]
        %v315 = vld [vmem:[#allocation5 + $0x30] sm:$0xff]
        %v316 = vld [vmem:[#allocation5 + $0x38] sm:$0xff]
        %v317 = vld [vmem:[#allocation5 + $0x40] sm:$0xff]
        %v318 = vld [vmem:[#allocation5 + $0x48] sm:$0xff]
        %v319 = vld [vmem:[#allocation5 + $0x50] sm:$0xff]
        %v320 = vld [vmem:[#allocation5 + $0x58] sm:$0xff]
        %v321 = vld [vmem:[#allocation5 + $0x60] sm:$0xff]
        %v322 = vld [vmem:[#allocation5 + $0x68] sm:$0xff]
        %v323 = vld [vmem:[#allocation5 + $0x70] sm:$0xff]
        %v324 = vld [vmem:[#allocation5 + $0x78] sm:$0xff]
        %v325 = vld [vmem:[#allocation5 + $0x80] sm:$0xff]
        %v326 = vld [vmem:[#allocation5 + $0x88] sm:$0xff]
        %v327 = vld [vmem:[#allocation5 + $0x90] sm:$0xff]
        %v328 = vld [vmem:[#allocation5 + $0x98] sm:$0xff]
        %v329 = vld [vmem:[#allocation5 + $0xa0] sm:$0xff]
        %v330 = vld [vmem:[#allocation5 + $0xa8] sm:$0xff]
        %v331 = vld [vmem:[#allocation5 + $0xb0] sm:$0xff]
        %v332 = vld [vmem:[#allocation5 + $0xb8] sm:$0xff]
        %v333 = vld [vmem:[#allocation5 + $0xc0] sm:$0xff]
        %v334 = vld [vmem:[#allocation5 + $0xc8] sm:$0xff]
        %v335 = vld [vmem:[#allocation5 + $0xd0] sm:$0xff]
        %v336 = vld [vmem:[#allocation5 + $0xd8] sm:$0xff]
        %v337 = vld [vmem:[#allocation5 + $0xe0] sm:$0xff]
        %v338 = vld [vmem:[#allocation5 + $0xe8] sm:$0xff]
        %v339 = vld [vmem:[#allocation5 + $0xf0] sm:$0xff]
        %v340 = vld [vmem:[#allocation5 + $0xf8] sm:$0xff]
        %v341 = vld [vmem:[#allocation5 + $0x100] sm:$0xff]
        %v342 = vld [vmem:[#allocation5 + $0x108] sm:$0xff]
        %v343 = vld [vmem:[#allocation5 + $0x110] sm:$0xff]
        %v344 = vld [vmem:[#allocation5 + $0x118] sm:$0xff]
        %v345 = vld [vmem:[#allocation5 + $0x120] sm:$0xff]
        %v346 = vld [vmem:[#allocation5 + $0x128] sm:$0xff]
        %v347 = vld [vmem:[#allocation5 + $0x130] sm:$0xff]
        %v348 = vld [vmem:[#allocation5 + $0x138] sm:$0xff]
        %v349 = vld [vmem:[#allocation5 + $0x140] sm:$0xff]
        %v350 = vld [vmem:[#allocation5 + $0x148] sm:$0xff]
        %v351 = vld [vmem:[#allocation5 + $0x150] sm:$0xff]
        %v352 = vld [vmem:[#allocation5 + $0x158] sm:$0xff]
        %v353 = vld [vmem:[#allocation5 + $0x160] sm:$0xff]
        %v354 = vld [vmem:[#allocation5 + $0x168] sm:$0xff]
        %v355 = vld [vmem:[#allocation5 + $0x170] sm:$0xff]
        %v356 = vld [vmem:[#allocation5 + $0x178] sm:$0xff]
        %v357 = vld [vmem:[#allocation5 + $0x180] sm:$0xff]
        %v358 = vld [vmem:[#allocation5 + $0x188] sm:$0xff]
        %v359 = vld [vmem:[#allocation5 + $0x190] sm:$0xff]
        %v360 = vld [vmem:[#allocation5 + $0x198] sm:$0xff]
        %v361 = vld [vmem:[#allocation5 + $0x1a0] sm:$0xff]
        %v362 = vld [vmem:[#allocation5 + $0x1a8] sm:$0xff]
        %v363 = vld [vmem:[#allocation5 + $0x1b0] sm:$0xff]
        %v364 = vld [vmem:[#allocation5 + $0x1b8] sm:$0xff]
        %v365 = vld [vmem:[#allocation5 + $0x1c0] sm:$0xff]
        %v366 = vld [vmem:[#allocation5 + $0x1c8] sm:$0xff]
        %v367 = vld [vmem:[#allocation5 + $0x1d0] sm:$0xff]
        %v368 = vld [vmem:[#allocation5 + $0x1d8] sm:$0xff]
        %v369 = vld [vmem:[#allocation5 + $0x1e0] sm:$0xff]
        %v370 = vld [vmem:[#allocation5 + $0x1e8] sm:$0xff]
        %v371 = vld [vmem:[#allocation5 + $0x1f0] sm:$0xff]
        %v372 = vld [vmem:[#allocation5 + $0x1f8] sm:$0xff]
        %s373 = smul.u32 %s30, 8
        %v374 = vld [vmem:[#allocation8] sm:$0xff]
        %v375 = vld [vmem:[#allocation10] sm:$0xff]
        %v376 = vld [vmem:[%s261] sm:$0xff]
        %v377 = vld [vmem:[%s261 + $0x8] sm:$0xff]
        %v378 = vld [vmem:[%s261 + $0x10] sm:$0xff]
        %v379 = vld [vmem:[%s261 + $0x18] sm:$0xff]
        %380 = vmatprep.subr.mxu0 %v310
        %381 = vmatpush1.msra.mxu0 %v309
        %382 = vmatprep.subr.mxu0 %v314
        %383 = vmatpush1.msra.mxu0 %v313
        %384 = vmatprep.subr.mxu0 %v318
        %385 = vmatpush1.msra.mxu0 %v317
        %386 = vmatprep.subr.mxu0 %v322
        %387 = vmatpush1.msra.mxu0 %v321
        %388 = vmatprep.subr.mxu0 %v326
        %389 = vmatpush1.msra.mxu0 %v325
        %390 = vmatprep.subr.mxu0 %v330
        %391 = vmatpush1.msra.mxu0 %v329
        %392 = vmatprep.subr.mxu0 %v334
        %393 = vmatpush1.msra.mxu0 %v333
        %394 = vmatprep.subr.mxu0 %v338
        %395 = vmatpush1.msra.mxu0 %v337
        %396 = vmatprep.subr.mxu0 %v342
        %397 = vmatpush1.msra.mxu0 %v341
        %398 = vmatprep.subr.mxu0 %v346
        %399 = vmatpush1.msra.mxu0 %v345
        %400 = vmatprep.subr.mxu0 %v350
        %401 = vmatpush1.msra.mxu0 %v349
        %402 = vmatprep.subr.mxu0 %v354
        %403 = vmatpush1.msra.mxu0 %v353
        %404 = vmatprep.subr.mxu0 %v358
        %405 = vmatpush1.msra.mxu0 %v357
        %406 = vmatprep.subr.mxu0 %v362
        %407 = vmatpush1.msra.mxu0 %v361
        %408 = vmatprep.subr.mxu0 %v366
        %409 = vmatpush1.msra.mxu0 %v365
        %410 = vmatprep.subr.mxu0 %v370
        %411 = vmatpush1.msra.mxu0 %v369
        %412 = vmatprep.subr.mxu0 0.0
        %413 = vmatpush1.msra.mxu0 0.0
        %414 = vmatprep.subr.mxu0 0.0
        %415 = vmatpush1.msra.mxu0 0.0
        %416 = vmatprep.subr.mxu0 0.0
        %417 = vmatpush1.msra.mxu0 0.0
        %418 = vmatprep.subr.mxu0 0.0
        %419 = vmatpush1.msra.mxu0 0.0
        %420 = vmatprep.subr.mxu0 0.0
        %421 = vmatpush1.msra.mxu0 0.0
        %422 = vmatprep.subr.mxu0 0.0
        %423 = vmatpush1.msra.mxu0 0.0
        %424 = vmatprep.subr.mxu0 0.0
        %425 = vmatpush1.msra.mxu0 0.0
        %426 = vmatprep.subr.mxu0 0.0
        %427 = vmatpush1.msra.mxu0 0.0
        %428 = vmatprep.subr.mxu0 0.0
        %429 = vmatpush1.msra.mxu0 0.0
        %430 = vmatprep.subr.mxu0 0.0
        %431 = vmatpush1.msra.mxu0 0.0
        %432 = vmatprep.subr.mxu0 0.0
        %433 = vmatpush1.msra.mxu0 0.0
        %434 = vmatprep.subr.mxu0 0.0
        %435 = vmatpush1.msra.mxu0 0.0
        %436 = vmatprep.subr.mxu0 0.0
        %437 = vmatpush1.msra.mxu0 0.0
        %438 = vmatprep.subr.mxu0 0.0
        %439 = vmatpush1.msra.mxu0 0.0
        %440 = vmatprep.subr.mxu0 0.0
        %441 = vmatpush1.msra.mxu0 0.0
        %442 = vmatprep.subr.mxu0 0.0
        %443 = vmatpush1.msra.mxu0 0.0
        %444 = vmatprep.mubr.f32.mxu0 0.0
        %445 = vmatmul.mubr.f32.gmra.mrb[0].mxu0 %v374
        %v446 = vpop.f32.mrb[0].mxu0
        %v447 = vadd.f32 0.0, %v446
        %v448 = vpop.f32.mrb[0].mxu0
        %v449 = vadd.f32 0.0, %v448
        %450 = vdwg.mxu0
        %451 = vmatprep.subr.mxu0 %v312
        %452 = vmatpush1.msra.mxu0 %v311
        %453 = vmatprep.subr.mxu0 %v316
        %454 = vmatpush1.msra.mxu0 %v315
        %455 = vmatprep.subr.mxu0 %v320
        %456 = vmatpush1.msra.mxu0 %v319
        %457 = vmatprep.subr.mxu0 %v324
        %458 = vmatpush1.msra.mxu0 %v323
        %459 = vmatprep.subr.mxu0 %v328
        %460 = vmatpush1.msra.mxu0 %v327
        %461 = vmatprep.subr.mxu0 %v332
        %462 = vmatpush1.msra.mxu0 %v331
        %463 = vmatprep.subr.mxu0 %v336
        %464 = vmatpush1.msra.mxu0 %v335
        %465 = vmatprep.subr.mxu0 %v340
        %466 = vmatpush1.msra.mxu0 %v339
        %467 = vmatprep.subr.mxu0 %v344
        %468 = vmatpush1.msra.mxu0 %v343
        %469 = vmatprep.subr.mxu0 %v348
        %470 = vmatpush1.msra.mxu0 %v347
        %471 = vmatprep.subr.mxu0 %v352
        %472 = vmatpush1.msra.mxu0 %v351
        %473 = vmatprep.subr.mxu0 %v356
        %474 = vmatpush1.msra.mxu0 %v355
        %475 = vmatprep.subr.mxu0 %v360
        %476 = vmatpush1.msra.mxu0 %v359
        %477 = vmatprep.subr.mxu0 %v364
        %478 = vmatpush1.msra.mxu0 %v363
        %479 = vmatprep.subr.mxu0 %v368
        %480 = vmatpush1.msra.mxu0 %v367
        %481 = vmatprep.subr.mxu0 %v372
        %482 = vmatpush1.msra.mxu0 %v371
        %483 = vmatprep.subr.mxu0 0.0
        %484 = vmatpush1.msra.mxu0 0.0
        %485 = vmatprep.subr.mxu0 0.0
        %486 = vmatpush1.msra.mxu0 0.0
        %487 = vmatprep.subr.mxu0 0.0
        %488 = vmatpush1.msra.mxu0 0.0
        %489 = vmatprep.subr.mxu0 0.0
        %490 = vmatpush1.msra.mxu0 0.0
        %491 = vmatprep.subr.mxu0 0.0
        %492 = vmatpush1.msra.mxu0 0.0
        %493 = vmatprep.subr.mxu0 0.0
        %494 = vmatpush1.msra.mxu0 0.0
        %495 = vmatprep.subr.mxu0 0.0
        %496 = vmatpush1.msra.mxu0 0.0
        %497 = vmatprep.subr.mxu0 0.0
        %498 = vmatpush1.msra.mxu0 0.0
        %499 = vmatprep.subr.mxu0 0.0
        %500 = vmatpush1.msra.mxu0 0.0
        %501 = vmatprep.subr.mxu0 0.0
        %502 = vmatpush1.msra.mxu0 0.0
        %503 = vmatprep.subr.mxu0 0.0
        %504 = vmatpush1.msra.mxu0 0.0
        %505 = vmatprep.subr.mxu0 0.0
        %506 = vmatpush1.msra.mxu0 0.0
        %507 = vmatprep.subr.mxu0 0.0
        %508 = vmatpush1.msra.mxu0 0.0
        %509 = vmatprep.subr.mxu0 0.0
        %510 = vmatpush1.msra.mxu0 0.0
        %511 = vmatprep.subr.mxu0 0.0
        %512 = vmatpush1.msra.mxu0 0.0
        %513 = vmatprep.subr.mxu0 0.0
        %514 = vmatpush1.msra.mxu0 0.0
        %515 = vmatprep.mubr.f32.mxu0 0.0
        %516 = vmatmul.mubr.f32.gmra.mrb[0].mxu0 %v374
        %v517 = vpop.f32.mrb[0].mxu0
        %v518 = vadd.f32 0.0, %v517
        %v519 = vpop.f32.mrb[0].mxu0
        %v520 = vadd.f32 0.0, %v519
        %521 = vdwg.mxu0
        %v522 = vadd.f32 %v376, %v447
        %v523 = vadd.f32 %v377, %v449
        %v524 = vadd.f32 %v378, %v518
        %v525 = vadd.f32 %v379, %v520
        %v526 = vxor.u32 %v522, 2147483648
        %v527 = vmul.f32 %v526, 1.442695
        %v528 = vpow.pop %v527
        %v529 = vadd.f32 %v528, 1.0
        %v530 = vrcp.pop %v529
        %v531 = vmul.f32 1.0, %v530
        %v532 = vxor.u32 %v523, 2147483648
        %v533 = vmul.f32 %v532, 1.442695
        %v534 = vpow.pop %v533
        %v535 = vadd.f32 %v534, 1.0
        %v536 = vrcp.pop %v535
        %v537 = vmul.f32 1.0, %v536
        %v538 = vtanh.pop %v524
        %v539 = vxor.u32 %v525, 2147483648
        %v540 = vmul.f32 %v539, 1.442695
        %v541 = vpow.pop %v540
        %v542 = vadd.f32 %v541, 1.0
        %v543 = vrcp.pop %v542
        %v544 = vmul.f32 1.0, %v543
        %v545 = vmul.f32 %v537, %v375
        %v546 = vmul.f32 %v531, %v538
        %v547 = vadd.f32 %v545, %v546
        %v548 = vtanh.pop %v547
        %v549 = vmul.f32 %v544, %v548
        %v550 = vstv %s373
        %vm551 = vcmp.gt.s32.totalorder %v308, %v550
        %v552 = vsel %vm551, 1, 0
        %553 = vset.pattern.permute.xlu0 0
        %554 = vperm.xlu0 %553, %v552
        %v555 = vpop.permute.xlu0 %554
        %vm556 = vcmp.eq.s32.totalorder %v555, 1
        %v557 = vsel %vm556, %v549, %v374
        %v558 = vsel %vm556, %v547, %v375
        %v559 = vsel %vm556, %v549, 0.0
        %560 = vst [vmem:[%s291] sm:$0xff] %v559
        %s561 = scalar_lea.vmem %s261, 32 [#allocation2]
        %v562 = vld [vmem:[%s561] sm:$0xff]
        %v563 = vld [vmem:[%s561 + $0x8] sm:$0xff]
        %v564 = vld [vmem:[%s561 + $0x10] sm:$0xff]
        %v565 = vld [vmem:[%s561 + $0x18] sm:$0xff]
        %566 = vmatprep.subr.mxu0 %v310
        %567 = vmatpush1.msra.mxu0 %v309
        %568 = vmatprep.subr.mxu0 %v314
        %569 = vmatpush1.msra.mxu0 %v313
        %570 = vmatprep.subr.mxu0 %v318
        %571 = vmatpush1.msra.mxu0 %v317
        %572 = vmatprep.subr.mxu0 %v322
        %573 = vmatpush1.msra.mxu0 %v321
        %574 = vmatprep.subr.mxu0 %v326
        %575 = vmatpush1.msra.mxu0 %v325
        %576 = vmatprep.subr.mxu0 %v330
        %577 = vmatpush1.msra.mxu0 %v329
        %578 = vmatprep.subr.mxu0 %v334
        %579 = vmatpush1.msra.mxu0 %v333
        %580 = vmatprep.subr.mxu0 %v338
        %581 = vmatpush1.msra.mxu0 %v337
        %582 = vmatprep.subr.mxu0 %v342
        %583 = vmatpush1.msra.mxu0 %v341
        %584 = vmatprep.subr.mxu0 %v346
        %585 = vmatpush1.msra.mxu0 %v345
        %586 = vmatprep.subr.mxu0 %v350
        %587 = vmatpush1.msra.mxu0 %v349
        %588 = vmatprep.subr.mxu0 %v354
        %589 = vmatpush1.msra.mxu0 %v353
        %590 = vmatprep.subr.mxu0 %v358
        %591 = vmatpush1.msra.mxu0 %v357
        %592 = vmatprep.subr.mxu0 %v362
        %593 = vmatpush1.msra.mxu0 %v361
        %594 = vmatprep.subr.mxu0 %v366
        %595 = vmatpush1.msra.mxu0 %v365
        %596 = vmatprep.subr.mxu0 %v370
        %597 = vmatpush1.msra.mxu0 %v369
        %598 = vmatprep.subr.mxu0 0.0
        %599 = vmatpush1.msra.mxu0 0.0
        %600 = vmatprep.subr.mxu0 0.0
        %601 = vmatpush1.msra.mxu0 0.0
        %602 = vmatprep.subr.mxu0 0.0
        %603 = vmatpush1.msra.mxu0 0.0
        %604 = vmatprep.subr.mxu0 0.0
        %605 = vmatpush1.msra.mxu0 0.0
        %606 = vmatprep.subr.mxu0 0.0
        %607 = vmatpush1.msra.mxu0 0.0
        %608 = vmatprep.subr.mxu0 0.0
        %609 = vmatpush1.msra.mxu0 0.0
        %610 = vmatprep.subr.mxu0 0.0
        %611 = vmatpush1.msra.mxu0 0.0
        %612 = vmatprep.subr.mxu0 0.0
        %613 = vmatpush1.msra.mxu0 0.0
        %614 = vmatprep.subr.mxu0 0.0
        %615 = vmatpush1.msra.mxu0 0.0
        %616 = vmatprep.subr.mxu0 0.0
        %617 = vmatpush1.msra.mxu0 0.0
        %618 = vmatprep.subr.mxu0 0.0
        %619 = vmatpush1.msra.mxu0 0.0
        %620 = vmatprep.subr.mxu0 0.0
        %621 = vmatpush1.msra.mxu0 0.0
        %622 = vmatprep.subr.mxu0 0.0
        %623 = vmatpush1.msra.mxu0 0.0
        %624 = vmatprep.subr.mxu0 0.0
        %625 = vmatpush1.msra.mxu0 0.0
        %626 = vmatprep.subr.mxu0 0.0
        %627 = vmatpush1.msra.mxu0 0.0
        %628 = vmatprep.subr.mxu0 0.0
        %629 = vmatpush1.msra.mxu0 0.0
        %630 = vmatprep.mubr.f32.mxu0 0.0
        %631 = vmatmul.mubr.f32.gmra.mrb[0].mxu0 %v557
        %v632 = vpop.f32.mrb[0].mxu0
        %v633 = vadd.f32 0.0, %v632
        %v634 = vpop.f32.mrb[0].mxu0
        %v635 = vadd.f32 0.0, %v634
        %636 = vdwg.mxu0
        %637 = vmatprep.subr.mxu0 %v312
        %638 = vmatpush1.msra.mxu0 %v311
        %639 = vmatprep.subr.mxu0 %v316
        %640 = vmatpush1.msra.mxu0 %v315
        %641 = vmatprep.subr.mxu0 %v320
        %642 = vmatpush1.msra.mxu0 %v319
        %643 = vmatprep.subr.mxu0 %v324
        %644 = vmatpush1.msra.mxu0 %v323
        %645 = vmatprep.subr.mxu0 %v328
        %646 = vmatpush1.msra.mxu0 %v327
        %647 = vmatprep.subr.mxu0 %v332
        %648 = vmatpush1.msra.mxu0 %v331
        %649 = vmatprep.subr.mxu0 %v336
        %650 = vmatpush1.msra.mxu0 %v335
        %651 = vmatprep.subr.mxu0 %v340
        %652 = vmatpush1.msra.mxu0 %v339
        %653 = vmatprep.subr.mxu0 %v344
        %654 = vmatpush1.msra.mxu0 %v343
        %655 = vmatprep.subr.mxu0 %v348
        %656 = vmatpush1.msra.mxu0 %v347
        %657 = vmatprep.subr.mxu0 %v352
        %658 = vmatpush1.msra.mxu0 %v351
        %659 = vmatprep.subr.mxu0 %v356
        %660 = vmatpush1.msra.mxu0 %v355
        %661 = vmatprep.subr.mxu0 %v360
        %662 = vmatpush1.msra.mxu0 %v359
        %663 = vmatprep.subr.mxu0 %v364
        %664 = vmatpush1.msra.mxu0 %v363
        %665 = vmatprep.subr.mxu0 %v368
        %666 = vmatpush1.msra.mxu0 %v367
        %667 = vmatprep.subr.mxu0 %v372
        %668 = vmatpush1.msra.mxu0 %v371
        %669 = vmatprep.subr.mxu0 0.0
        %670 = vmatpush1.msra.mxu0 0.0
        %671 = vmatprep.subr.mxu0 0.0
        %672 = vmatpush1.msra.mxu0 0.0
        %673 = vmatprep.subr.mxu0 0.0
        %674 = vmatpush1.msra.mxu0 0.0
        %675 = vmatprep.subr.mxu0 0.0
        %676 = vmatpush1.msra.mxu0 0.0
        %677 = vmatprep.subr.mxu0 0.0
        %678 = vmatpush1.msra.mxu0 0.0
        %679 = vmatprep.subr.mxu0 0.0
        %680 = vmatpush1.msra.mxu0 0.0
        %681 = vmatprep.subr.mxu0 0.0
        %682 = vmatpush1.msra.mxu0 0.0
        %683 = vmatprep.subr.mxu0 0.0
        %684 = vmatpush1.msra.mxu0 0.0
        %685 = vmatprep.subr.mxu0 0.0
        %686 = vmatpush1.msra.mxu0 0.0
        %687 = vmatprep.subr.mxu0 0.0
        %688 = vmatpush1.msra.mxu0 0.0
        %689 = vmatprep.subr.mxu0 0.0
        %690 = vmatpush1.msra.mxu0 0.0
        %691 = vmatprep.subr.mxu0 0.0
        %692 = vmatpush1.msra.mxu0 0.0
        %693 = vmatprep.subr.mxu0 0.0
        %694 = vmatpush1.msra.mxu0 0.0
        %695 = vmatprep.subr.mxu0 0.0
        %696 = vmatpush1.msra.mxu0 0.0
        %697 = vmatprep.subr.mxu0 0.0
        %698 = vmatpush1.msra.mxu0 0.0
        %699 = vmatprep.subr.mxu0 0.0
        %700 = vmatpush1.msra.mxu0 0.0
        %701 = vmatprep.mubr.f32.mxu0 0.0
        %702 = vmatmul.mubr.f32.gmra.mrb[0].mxu0 %v557
        %v703 = vpop.f32.mrb[0].mxu0
        %v704 = vadd.f32 0.0, %v703
        %v705 = vpop.f32.mrb[0].mxu0
        %v706 = vadd.f32 0.0, %v705
        %707 = vdwg.mxu0
        %v708 = vadd.f32 %v562, %v633
        %v709 = vadd.f32 %v563, %v635
        %v710 = vadd.f32 %v564, %v704
        %v711 = vadd.f32 %v565, %v706
        %v712 = vxor.u32 %v708, 2147483648
        %v713 = vmul.f32 %v712, 1.442695
        %v714 = vpow.pop %v713
        %v715 = vadd.f32 %v714, 1.0
        %v716 = vrcp.pop %v715
        %v717 = vmul.f32 1.0, %v716
        %v718 = vxor.u32 %v709, 2147483648
        %v719 = vmul.f32 %v718, 1.442695
        %v720 = vpow.pop %v719
        %v721 = vadd.f32 %v720, 1.0
        %v722 = vrcp.pop %v721
        %v723 = vmul.f32 1.0, %v722
        %v724 = vtanh.pop %v710
        %v725 = vxor.u32 %v711, 2147483648
        %v726 = vmul.f32 %v725, 1.442695
        %v727 = vpow.pop %v726
        %v728 = vadd.f32 %v727, 1.0
        %v729 = vrcp.pop %v728
        %v730 = vmul.f32 1.0, %v729
        %v731 = vmul.f32 %v723, %v558
        %v732 = vmul.f32 %v717, %v724
        %v733 = vadd.f32 %v731, %v732
        %v734 = vtanh.pop %v733
        %v735 = vmul.f32 %v730, %v734
        %s736 = sadd.s32 %s373, 1
        %v737 = vstv %s736
        %vm738 = vcmp.gt.s32.totalorder %v308, %v737
        %v739 = vsel %vm738, 1, 0
        %740 = vset.pattern.permute.xlu0 0
        %741 = vperm.xlu0 %740, %v739
        %v742 = vpop.permute.xlu0 %741
        %vm743 = vcmp.eq.s32.totalorder %v742, 1
        %v744 = vsel %vm743, %v735, %v557
        %v745 = vsel %vm743, %v733, %v558
        %v746 = vsel %vm743, %v735, 0.0
        %s747 = scalar_lea.vmem %s291, 8 [#allocation7]
        %748 = vst [vmem:[%s747] sm:$0xff] %v746
        %s749 = scalar_lea.vmem %s261, 64 [#allocation2]
        %v750 = vld [vmem:[%s749] sm:$0xff]
        %v751 = vld [vmem:[%s749 + $0x8] sm:$0xff]
        %v752 = vld [vmem:[%s749 + $0x10] sm:$0xff]
        %v753 = vld [vmem:[%s749 + $0x18] sm:$0xff]
        %754 = vmatprep.subr.mxu0 %v310
        %755 = vmatpush1.msra.mxu0 %v309
        %756 = vmatprep.subr.mxu0 %v314
        %757 = vmatpush1.msra.mxu0 %v313
        %758 = vmatprep.subr.mxu0 %v318
        %759 = vmatpush1.msra.mxu0 %v317
        %760 = vmatprep.subr.mxu0 %v322
        %761 = vmatpush1.msra.mxu0 %v321
        %762 = vmatprep.subr.mxu0 %v326
        %763 = vmatpush1.msra.mxu0 %v325
        %764 = vmatprep.subr.mxu0 %v330
        %765 = vmatpush1.msra.mxu0 %v329
        %766 = vmatprep.subr.mxu0 %v334
        %767 = vmatpush1.msra.mxu0 %v333
        %768 = vmatprep.subr.mxu0 %v338
        %769 = vmatpush1.msra.mxu0 %v337
        %770 = vmatprep.subr.mxu0 %v342
        %771 = vmatpush1.msra.mxu0 %v341
        %772 = vmatprep.subr.mxu0 %v346
        %773 = vmatpush1.msra.mxu0 %v345
        %774 = vmatprep.subr.mxu0 %v350
        %775 = vmatpush1.msra.mxu0 %v349
        %776 = vmatprep.subr.mxu0 %v354
        %777 = vmatpush1.msra.mxu0 %v353
        %778 = vmatprep.subr.mxu0 %v358
        %779 = vmatpush1.msra.mxu0 %v357
        %780 = vmatprep.subr.mxu0 %v362
        %781 = vmatpush1.msra.mxu0 %v361
        %782 = vmatprep.subr.mxu0 %v366
        %783 = vmatpush1.msra.mxu0 %v365
        %784 = vmatprep.subr.mxu0 %v370
        %785 = vmatpush1.msra.mxu0 %v369
        %786 = vmatprep.subr.mxu0 0.0
        %787 = vmatpush1.msra.mxu0 0.0
        %788 = vmatprep.subr.mxu0 0.0
        %789 = vmatpush1.msra.mxu0 0.0
        %790 = vmatprep.subr.mxu0 0.0
        %791 = vmatpush1.msra.mxu0 0.0
        %792 = vmatprep.subr.mxu0 0.0
        %793 = vmatpush1.msra.mxu0 0.0
        %794 = vmatprep.subr.mxu0 0.0
        %795 = vmatpush1.msra.mxu0 0.0
        %796 = vmatprep.subr.mxu0 0.0
        %797 = vmatpush1.msra.mxu0 0.0
        %798 = vmatprep.subr.mxu0 0.0
        %799 = vmatpush1.msra.mxu0 0.0
        %800 = vmatprep.subr.mxu0 0.0
        %801 = vmatpush1.msra.mxu0 0.0
        %802 = vmatprep.subr.mxu0 0.0
        %803 = vmatpush1.msra.mxu0 0.0
        %804 = vmatprep.subr.mxu0 0.0
        %805 = vmatpush1.msra.mxu0 0.0
        %806 = vmatprep.subr.mxu0 0.0
        %807 = vmatpush1.msra.mxu0 0.0
        %808 = vmatprep.subr.mxu0 0.0
        %809 = vmatpush1.msra.mxu0 0.0
        %810 = vmatprep.subr.mxu0 0.0
        %811 = vmatpush1.msra.mxu0 0.0
        %812 = vmatprep.subr.mxu0 0.0
        %813 = vmatpush1.msra.mxu0 0.0
        %814 = vmatprep.subr.mxu0 0.0
        %815 = vmatpush1.msra.mxu0 0.0
        %816 = vmatprep.subr.mxu0 0.0
        %817 = vmatpush1.msra.mxu0 0.0
        %818 = vmatprep.mubr.f32.mxu0 0.0
        %819 = vmatmul.mubr.f32.gmra.mrb[0].mxu0 %v744
        %v820 = vpop.f32.mrb[0].mxu0
        %v821 = vadd.f32 0.0, %v820
        %v822 = vpop.f32.mrb[0].mxu0
        %v823 = vadd.f32 0.0, %v822
        %824 = vdwg.mxu0
        %825 = vmatprep.subr.mxu0 %v312
        %826 = vmatpush1.msra.mxu0 %v311
        %827 = vmatprep.subr.mxu0 %v316
        %828 = vmatpush1.msra.mxu0 %v315
        %829 = vmatprep.subr.mxu0 %v320
        %830 = vmatpush1.msra.mxu0 %v319
        %831 = vmatprep.subr.mxu0 %v324
        %832 = vmatpush1.msra.mxu0 %v323
        %833 = vmatprep.subr.mxu0 %v328
        %834 = vmatpush1.msra.mxu0 %v327
        %835 = vmatprep.subr.mxu0 %v332
        %836 = vmatpush1.msra.mxu0 %v331
        %837 = vmatprep.subr.mxu0 %v336
        %838 = vmatpush1.msra.mxu0 %v335
        %839 = vmatprep.subr.mxu0 %v340
        %840 = vmatpush1.msra.mxu0 %v339
        %841 = vmatprep.subr.mxu0 %v344
        %842 = vmatpush1.msra.mxu0 %v343
        %843 = vmatprep.subr.mxu0 %v348
        %844 = vmatpush1.msra.mxu0 %v347
        %845 = vmatprep.subr.mxu0 %v352
        %846 = vmatpush1.msra.mxu0 %v351
        %847 = vmatprep.subr.mxu0 %v356
        %848 = vmatpush1.msra.mxu0 %v355
        %849 = vmatprep.subr.mxu0 %v360
        %850 = vmatpush1.msra.mxu0 %v359
        %851 = vmatprep.subr.mxu0 %v364
        %852 = vmatpush1.msra.mxu0 %v363
        %853 = vmatprep.subr.mxu0 %v368
        %854 = vmatpush1.msra.mxu0 %v367
        %855 = vmatprep.subr.mxu0 %v372
        %856 = vmatpush1.msra.mxu0 %v371
        %857 = vmatprep.subr.mxu0 0.0
        %858 = vmatpush1.msra.mxu0 0.0
        %859 = vmatprep.subr.mxu0 0.0
        %860 = vmatpush1.msra.mxu0 0.0
        %861 = vmatprep.subr.mxu0 0.0
        %862 = vmatpush1.msra.mxu0 0.0
        %863 = vmatprep.subr.mxu0 0.0
        %864 = vmatpush1.msra.mxu0 0.0
        %865 = vmatprep.subr.mxu0 0.0
        %866 = vmatpush1.msra.mxu0 0.0
        %867 = vmatprep.subr.mxu0 0.0
        %868 = vmatpush1.msra.mxu0 0.0
        %869 = vmatprep.subr.mxu0 0.0
        %870 = vmatpush1.msra.mxu0 0.0
        %871 = vmatprep.subr.mxu0 0.0
        %872 = vmatpush1.msra.mxu0 0.0
        %873 = vmatprep.subr.mxu0 0.0
        %874 = vmatpush1.msra.mxu0 0.0
        %875 = vmatprep.subr.mxu0 0.0
        %876 = vmatpush1.msra.mxu0 0.0
        %877 = vmatprep.subr.mxu0 0.0
        %878 = vmatpush1.msra.mxu0 0.0
        %879 = vmatprep.subr.mxu0 0.0
        %880 = vmatpush1.msra.mxu0 0.0
        %881 = vmatprep.subr.mxu0 0.0
        %882 = vmatpush1.msra.mxu0 0.0
        %883 = vmatprep.subr.mxu0 0.0
        %884 = vmatpush1.msra.mxu0 0.0
        %885 = vmatprep.subr.mxu0 0.0
        %886 = vmatpush1.msra.mxu0 0.0
        %887 = vmatprep.subr.mxu0 0.0
        %888 = vmatpush1.msra.mxu0 0.0
        %889 = vmatprep.mubr.f32.mxu0 0.0
        %890 = vmatmul.mubr.f32.gmra.mrb[0].mxu0 %v744
        %v891 = vpop.f32.mrb[0].mxu0
        %v892 = vadd.f32 0.0, %v891
        %v893 = vpop.f32.mrb[0].mxu0
        %v894 = vadd.f32 0.0, %v893
        %895 = vdwg.mxu0
        %v896 = vadd.f32 %v750, %v821
        %v897 = vadd.f32 %v751, %v823
        %v898 = vadd.f32 %v752, %v892
        %v899 = vadd.f32 %v753, %v894
        %v900 = vxor.u32 %v896, 2147483648
        %v901 = vmul.f32 %v900, 1.442695
        %v902 = vpow.pop %v901
        %v903 = vadd.f32 %v902, 1.0
        %v904 = vrcp.pop %v903
        %v905 = vmul.f32 1.0, %v904
        %v906 = vxor.u32 %v897, 2147483648
        %v907 = vmul.f32 %v906, 1.442695
        %v908 = vpow.pop %v907
        %v909 = vadd.f32 %v908, 1.0
        %v910 = vrcp.pop %v909
        %v911 = vmul.f32 1.0, %v910
        %v912 = vtanh.pop %v898
        %v913 = vxor.u32 %v899, 2147483648
        %v914 = vmul.f32 %v913, 1.442695
        %v915 = vpow.pop %v914
        %v916 = vadd.f32 %v915, 1.0
        %v917 = vrcp.pop %v916
        %v918 = vmul.f32 1.0, %v917
        %v919 = vmul.f32 %v911, %v745
        %v920 = vmul.f32 %v905, %v912
        %v921 = vadd.f32 %v919, %v920
        %v922 = vtanh.pop %v921
        %v923 = vmul.f32 %v918, %v922
        %s924 = sadd.s32 %s373, 2
        %v925 = vstv %s924
        %vm926 = vcmp.gt.s32.totalorder %v308, %v925
        %v927 = vsel %vm926, 1, 0
        %928 = vset.pattern.permute.xlu0 0
        %929 = vperm.xlu0 %928, %v927
        %v930 = vpop.permute.xlu0 %929
        %vm931 = vcmp.eq.s32.totalorder %v930, 1
        %v932 = vsel %vm931, %v923, %v744
        %v933 = vsel %vm931, %v921, %v745
        %v934 = vsel %vm931, %v923, 0.0
        %s935 = scalar_lea.vmem %s291, 16 [#allocation7]
        %936 = vst [vmem:[%s935] sm:$0xff] %v934
        %s937 = scalar_lea.vmem %s261, 96 [#allocation2]
        %v938 = vld [vmem:[%s937] sm:$0xff]
        %v939 = vld [vmem:[%s937 + $0x8] sm:$0xff]
        %v940 = vld [vmem:[%s937 + $0x10] sm:$0xff]
        %v941 = vld [vmem:[%s937 + $0x18] sm:$0xff]
        %942 = vmatprep.subr.mxu0 %v310
        %943 = vmatpush1.msra.mxu0 %v309
        %944 = vmatprep.subr.mxu0 %v314
        %945 = vmatpush1.msra.mxu0 %v313
        %946 = vmatprep.subr.mxu0 %v318
        %947 = vmatpush1.msra.mxu0 %v317
        %948 = vmatprep.subr.mxu0 %v322
        %949 = vmatpush1.msra.mxu0 %v321
        %950 = vmatprep.subr.mxu0 %v326
        %951 = vmatpush1.msra.mxu0 %v325
        %952 = vmatprep.subr.mxu0 %v330
        %953 = vmatpush1.msra.mxu0 %v329
        %954 = vmatprep.subr.mxu0 %v334
        %955 = vmatpush1.msra.mxu0 %v333
        %956 = vmatprep.subr.mxu0 %v338
        %957 = vmatpush1.msra.mxu0 %v337
        %958 = vmatprep.subr.mxu0 %v342
        %959 = vmatpush1.msra.mxu0 %v341
        %960 = vmatprep.subr.mxu0 %v346
        %961 = vmatpush1.msra.mxu0 %v345
        %962 = vmatprep.subr.mxu0 %v350
        %963 = vmatpush1.msra.mxu0 %v349
        %964 = vmatprep.subr.mxu0 %v354
        %965 = vmatpush1.msra.mxu0 %v353
        %966 = vmatprep.subr.mxu0 %v358
        %967 = vmatpush1.msra.mxu0 %v357
        %968 = vmatprep.subr.mxu0 %v362
        %969 = vmatpush1.msra.mxu0 %v361
        %970 = vmatprep.subr.mxu0 %v366
        %971 = vmatpush1.msra.mxu0 %v365
        %972 = vmatprep.subr.mxu0 %v370
        %973 = vmatpush1.msra.mxu0 %v369
        %974 = vmatprep.subr.mxu0 0.0
        %975 = vmatpush1.msra.mxu0 0.0
        %976 = vmatprep.subr.mxu0 0.0
        %977 = vmatpush1.msra.mxu0 0.0
        %978 = vmatprep.subr.mxu0 0.0
        %979 = vmatpush1.msra.mxu0 0.0
        %980 = vmatprep.subr.mxu0 0.0
        %981 = vmatpush1.msra.mxu0 0.0
        %982 = vmatprep.subr.mxu0 0.0
        %983 = vmatpush1.msra.mxu0 0.0
        %984 = vmatprep.subr.mxu0 0.0
        %985 = vmatpush1.msra.mxu0 0.0
        %986 = vmatprep.subr.mxu0 0.0
        %987 = vmatpush1.msra.mxu0 0.0
        %988 = vmatprep.subr.mxu0 0.0
        %989 = vmatpush1.msra.mxu0 0.0
        %990 = vmatprep.subr.mxu0 0.0
        %991 = vmatpush1.msra.mxu0 0.0
        %992 = vmatprep.subr.mxu0 0.0
        %993 = vmatpush1.msra.mxu0 0.0
        %994 = vmatprep.subr.mxu0 0.0
        %995 = vmatpush1.msra.mxu0 0.0
        %996 = vmatprep.subr.mxu0 0.0
        %997 = vmatpush1.msra.mxu0 0.0
        %998 = vmatprep.subr.mxu0 0.0
        %999 = vmatpush1.msra.mxu0 0.0
        %1000 = vmatprep.subr.mxu0 0.0
        %1001 = vmatpush1.msra.mxu0 0.0
        %1002 = vmatprep.subr.mxu0 0.0
        %1003 = vmatpush1.msra.mxu0 0.0
        %1004 = vmatprep.subr.mxu0 0.0
        %1005 = vmatpush1.msra.mxu0 0.0
        %1006 = vmatprep.mubr.f32.mxu0 0.0
        %1007 = vmatmul.mubr.f32.gmra.mrb[0].mxu0 %v932
        %v1008 = vpop.f32.mrb[0].mxu0
        %v1009 = vadd.f32 0.0, %v1008
        %v1010 = vpop.f32.mrb[0].mxu0
        %v1011 = vadd.f32 0.0, %v1010
        %1012 = vdwg.mxu0
        %1013 = vmatprep.subr.mxu0 %v312
        %1014 = vmatpush1.msra.mxu0 %v311
        %1015 = vmatprep.subr.mxu0 %v316
        %1016 = vmatpush1.msra.mxu0 %v315
        %1017 = vmatprep.subr.mxu0 %v320
        %1018 = vmatpush1.msra.mxu0 %v319
        %1019 = vmatprep.subr.mxu0 %v324
        %1020 = vmatpush1.msra.mxu0 %v323
        %1021 = vmatprep.subr.mxu0 %v328
        %1022 = vmatpush1.msra.mxu0 %v327
        %1023 = vmatprep.subr.mxu0 %v332
        %1024 = vmatpush1.msra.mxu0 %v331
        %1025 = vmatprep.subr.mxu0 %v336
        %1026 = vmatpush1.msra.mxu0 %v335
        %1027 = vmatprep.subr.mxu0 %v340
        %1028 = vmatpush1.msra.mxu0 %v339
        %1029 = vmatprep.subr.mxu0 %v344
        %1030 = vmatpush1.msra.mxu0 %v343
        %1031 = vmatprep.subr.mxu0 %v348
        %1032 = vmatpush1.msra.mxu0 %v347
        %1033 = vmatprep.subr.mxu0 %v352
        %1034 = vmatpush1.msra.mxu0 %v351
        %1035 = vmatprep.subr.mxu0 %v356
        %1036 = vmatpush1.msra.mxu0 %v355
        %1037 = vmatprep.subr.mxu0 %v360
        %1038 = vmatpush1.msra.mxu0 %v359
        %1039 = vmatprep.subr.mxu0 %v364
        %1040 = vmatpush1.msra.mxu0 %v363
        %1041 = vmatprep.subr.mxu0 %v368
        %1042 = vmatpush1.msra.mxu0 %v367
        %1043 = vmatprep.subr.mxu0 %v372
        %1044 = vmatpush1.msra.mxu0 %v371
        %1045 = vmatprep.subr.mxu0 0.0
        %1046 = vmatpush1.msra.mxu0 0.0
        %1047 = vmatprep.subr.mxu0 0.0
        %1048 = vmatpush1.msra.mxu0 0.0
        %1049 = vmatprep.subr.mxu0 0.0
        %1050 = vmatpush1.msra.mxu0 0.0
        %1051 = vmatprep.subr.mxu0 0.0
        %1052 = vmatpush1.msra.mxu0 0.0
        %1053 = vmatprep.subr.mxu0 0.0
        %1054 = vmatpush1.msra.mxu0 0.0
        %1055 = vmatprep.subr.mxu0 0.0
        %1056 = vmatpush1.msra.mxu0 0.0
        %1057 = vmatprep.subr.mxu0 0.0
        %1058 = vmatpush1.msra.mxu0 0.0
        %1059 = vmatprep.subr.mxu0 0.0
        %1060 = vmatpush1.msra.mxu0 0.0
        %1061 = vmatprep.subr.mxu0 0.0
        %1062 = vmatpush1.msra.mxu0 0.0
        %1063 = vmatprep.subr.mxu0 0.0
        %1064 = vmatpush1.msra.mxu0 0.0
        %1065 = vmatprep.subr.mxu0 0.0
        %1066 = vmatpush1.msra.mxu0 0.0
        %1067 = vmatprep.subr.mxu0 0.0
        %1068 = vmatpush1.msra.mxu0 0.0
        %1069 = vmatprep.subr.mxu0 0.0
        %1070 = vmatpush1.msra.mxu0 0.0
        %1071 = vmatprep.subr.mxu0 0.0
        %1072 = vmatpush1.msra.mxu0 0.0
        %1073 = vmatprep.subr.mxu0 0.0
        %1074 = vmatpush1.msra.mxu0 0.0
        %1075 = vmatprep.subr.mxu0 0.0
        %1076 = vmatpush1.msra.mxu0 0.0
        %1077 = vmatprep.mubr.f32.mxu0 0.0
        %1078 = vmatmul.mubr.f32.gmra.mrb[0].mxu0 %v932
        %v1079 = vpop.f32.mrb[0].mxu0
        %v1080 = vadd.f32 0.0, %v1079
        %v1081 = vpop.f32.mrb[0].mxu0
        %v1082 = vadd.f32 0.0, %v1081
        %1083 = vdwg.mxu0
        %v1084 = vadd.f32 %v938, %v1009
        %v1085 = vadd.f32 %v939, %v1011
        %v1086 = vadd.f32 %v940, %v1080
        %v1087 = vadd.f32 %v941, %v1082
        %v1088 = vxor.u32 %v1084, 2147483648
        %v1089 = vmul.f32 %v1088, 1.442695
        %v1090 = vpow.pop %v1089
        %v1091 = vadd.f32 %v1090, 1.0
        %v1092 = vrcp.pop %v1091
        %v1093 = vmul.f32 1.0, %v1092
        %v1094 = vxor.u32 %v1085, 2147483648
        %v1095 = vmul.f32 %v1094, 1.442695
        %v1096 = vpow.pop %v1095
        %v1097 = vadd.f32 %v1096, 1.0
        %v1098 = vrcp.pop %v1097
        %v1099 = vmul.f32 1.0, %v1098
        %v1100 = vtanh.pop %v1086
        %v1101 = vxor.u32 %v1087, 2147483648
        %v1102 = vmul.f32 %v1101, 1.442695
        %v1103 = vpow.pop %v1102
        %v1104 = vadd.f32 %v1103, 1.0
        %v1105 = vrcp.pop %v1104
        %v1106 = vmul.f32 1.0, %v1105
        %v1107 = vmul.f32 %v1099, %v933
        %v1108 = vmul.f32 %v1093, %v1100
        %v1109 = vadd.f32 %v1107, %v1108
        %v1110 = vtanh.pop %v1109
        %v1111 = vmul.f32 %v1106, %v1110
        %s1112 = sadd.s32 %s373, 3
        %v1113 = vstv %s1112
        %vm1114 = vcmp.gt.s32.totalorder %v308, %v1113
        %v1115 = vsel %vm1114, 1, 0
        %1116 = vset.pattern.permute.xlu0 0
        %1117 = vperm.xlu0 %1116, %v1115
        %v1118 = vpop.permute.xlu0 %1117
        %vm1119 = vcmp.eq.s32.totalorder %v1118, 1
        %v1120 = vsel %vm1119, %v1111, %v932
        %v1121 = vsel %vm1119, %v1109, %v933
        %v1122 = vsel %vm1119, %v1111, 0.0
        %s1123 = scalar_lea.vmem %s291, 24 [#allocation7]
        %1124 = vst [vmem:[%s1123] sm:$0xff] %v1122
        %s1125 = scalar_lea.vmem %s261, 128 [#allocation2]
        %v1126 = vld [vmem:[%s1125] sm:$0xff]
        %v1127 = vld [vmem:[%s1125 + $0x8] sm:$0xff]
        %v1128 = vld [vmem:[%s1125 + $0x10] sm:$0xff]
        %v1129 = vld [vmem:[%s1125 + $0x18] sm:$0xff]
        %1130 = vmatprep.subr.mxu0 %v310
        %1131 = vmatpush1.msra.mxu0 %v309
        %1132 = vmatprep.subr.mxu0 %v314
        %1133 = vmatpush1.msra.mxu0 %v313
        %1134 = vmatprep.subr.mxu0 %v318
        %1135 = vmatpush1.msra.mxu0 %v317
        %1136 = vmatprep.subr.mxu0 %v322
        %1137 = vmatpush1.msra.mxu0 %v321
        %1138 = vmatprep.subr.mxu0 %v326
        %1139 = vmatpush1.msra.mxu0 %v325
        %1140 = vmatprep.subr.mxu0 %v330
        %1141 = vmatpush1.msra.mxu0 %v329
        %1142 = vmatprep.subr.mxu0 %v334
        %1143 = vmatpush1.msra.mxu0 %v333
        %1144 = vmatprep.subr.mxu0 %v338
        %1145 = vmatpush1.msra.mxu0 %v337
        %1146 = vmatprep.subr.mxu0 %v342
        %1147 = vmatpush1.msra.mxu0 %v341
        %1148 = vmatprep.subr.mxu0 %v346
        %1149 = vmatpush1.msra.mxu0 %v345
        %1150 = vmatprep.subr.mxu0 %v350
        %1151 = vmatpush1.msra.mxu0 %v349
        %1152 = vmatprep.subr.mxu0 %v354
        %1153 = vmatpush1.msra.mxu0 %v353
        %1154 = vmatprep.subr.mxu0 %v358
        %1155 = vmatpush1.msra.mxu0 %v357
        %1156 = vmatprep.subr.mxu0 %v362
        %1157 = vmatpush1.msra.mxu0 %v361
        %1158 = vmatprep.subr.mxu0 %v366
        %1159 = vmatpush1.msra.mxu0 %v365
        %1160 = vmatprep.subr.mxu0 %v370
        %1161 = vmatpush1.msra.mxu0 %v369
        %1162 = vmatprep.subr.mxu0 0.0
        %1163 = vmatpush1.msra.mxu0 0.0
        %1164 = vmatprep.subr.mxu0 0.0
        %1165 = vmatpush1.msra.mxu0 0.0
        %1166 = vmatprep.subr.mxu0 0.0
        %1167 = vmatpush1.msra.mxu0 0.0
        %1168 = vmatprep.subr.mxu0 0.0
        %1169 = vmatpush1.msra.mxu0 0.0
        %1170 = vmatprep.subr.mxu0 0.0
        %1171 = vmatpush1.msra.mxu0 0.0
        %1172 = vmatprep.subr.mxu0 0.0
        %1173 = vmatpush1.msra.mxu0 0.0
        %1174 = vmatprep.subr.mxu0 0.0
        %1175 = vmatpush1.msra.mxu0 0.0
        %1176 = vmatprep.subr.mxu0 0.0
        %1177 = vmatpush1.msra.mxu0 0.0
        %1178 = vmatprep.subr.mxu0 0.0
        %1179 = vmatpush1.msra.mxu0 0.0
        %1180 = vmatprep.subr.mxu0 0.0
        %1181 = vmatpush1.msra.mxu0 0.0
        %1182 = vmatprep.subr.mxu0 0.0
        %1183 = vmatpush1.msra.mxu0 0.0
        %1184 = vmatprep.subr.mxu0 0.0
        %1185 = vmatpush1.msra.mxu0 0.0
        %1186 = vmatprep.subr.mxu0 0.0
        %1187 = vmatpush1.msra.mxu0 0.0
        %1188 = vmatprep.subr.mxu0 0.0
        %1189 = vmatpush1.msra.mxu0 0.0
        %1190 = vmatprep.subr.mxu0 0.0
        %1191 = vmatpush1.msra.mxu0 0.0
        %1192 = vmatprep.subr.mxu0 0.0
        %1193 = vmatpush1.msra.mxu0 0.0
        %1194 = vmatprep.mubr.f32.mxu0 0.0
        %1195 = vmatmul.mubr.f32.gmra.mrb[0].mxu0 %v1120
        %v1196 = vpop.f32.mrb[0].mxu0
        %v1197 = vadd.f32 0.0, %v1196
        %v1198 = vpop.f32.mrb[0].mxu0
        %v1199 = vadd.f32 0.0, %v1198
        %1200 = vdwg.mxu0
        %1201 = vmatprep.subr.mxu0 %v312
        %1202 = vmatpush1.msra.mxu0 %v311
        %1203 = vmatprep.subr.mxu0 %v316
        %1204 = vmatpush1.msra.mxu0 %v315
        %1205 = vmatprep.subr.mxu0 %v320
        %1206 = vmatpush1.msra.mxu0 %v319
        %1207 = vmatprep.subr.mxu0 %v324
        %1208 = vmatpush1.msra.mxu0 %v323
        %1209 = vmatprep.subr.mxu0 %v328
        %1210 = vmatpush1.msra.mxu0 %v327
        %1211 = vmatprep.subr.mxu0 %v332
        %1212 = vmatpush1.msra.mxu0 %v331
        %1213 = vmatprep.subr.mxu0 %v336
        %1214 = vmatpush1.msra.mxu0 %v335
        %1215 = vmatprep.subr.mxu0 %v340
        %1216 = vmatpush1.msra.mxu0 %v339
        %1217 = vmatprep.subr.mxu0 %v344
        %1218 = vmatpush1.msra.mxu0 %v343
        %1219 = vmatprep.subr.mxu0 %v348
        %1220 = vmatpush1.msra.mxu0 %v347
        %1221 = vmatprep.subr.mxu0 %v352
        %1222 = vmatpush1.msra.mxu0 %v351
        %1223 = vmatprep.subr.mxu0 %v356
        %1224 = vmatpush1.msra.mxu0 %v355
        %1225 = vmatprep.subr.mxu0 %v360
        %1226 = vmatpush1.msra.mxu0 %v359
        %1227 = vmatprep.subr.mxu0 %v364
        %1228 = vmatpush1.msra.mxu0 %v363
        %1229 = vmatprep.subr.mxu0 %v368
        %1230 = vmatpush1.msra.mxu0 %v367
        %1231 = vmatprep.subr.mxu0 %v372
        %1232 = vmatpush1.msra.mxu0 %v371
        %1233 = vmatprep.subr.mxu0 0.0
        %1234 = vmatpush1.msra.mxu0 0.0
        %1235 = vmatprep.subr.mxu0 0.0
        %1236 = vmatpush1.msra.mxu0 0.0
        %1237 = vmatprep.subr.mxu0 0.0
        %1238 = vmatpush1.msra.mxu0 0.0
        %1239 = vmatprep.subr.mxu0 0.0
        %1240 = vmatpush1.msra.mxu0 0.0
        %1241 = vmatprep.subr.mxu0 0.0
        %1242 = vmatpush1.msra.mxu0 0.0
        %1243 = vmatprep.subr.mxu0 0.0
        %1244 = vmatpush1.msra.mxu0 0.0
        %1245 = vmatprep.subr.mxu0 0.0
        %1246 = vmatpush1.msra.mxu0 0.0
        %1247 = vmatprep.subr.mxu0 0.0
        %1248 = vmatpush1.msra.mxu0 0.0
        %1249 = vmatprep.subr.mxu0 0.0
        %1250 = vmatpush1.msra.mxu0 0.0
        %1251 = vmatprep.subr.mxu0 0.0
        %1252 = vmatpush1.msra.mxu0 0.0
        %1253 = vmatprep.subr.mxu0 0.0
        %1254 = vmatpush1.msra.mxu0 0.0
        %1255 = vmatprep.subr.mxu0 0.0
        %1256 = vmatpush1.msra.mxu0 0.0
        %1257 = vmatprep.subr.mxu0 0.0
        %1258 = vmatpush1.msra.mxu0 0.0
        %1259 = vmatprep.subr.mxu0 0.0
        %1260 = vmatpush1.msra.mxu0 0.0
        %1261 = vmatprep.subr.mxu0 0.0
        %1262 = vmatpush1.msra.mxu0 0.0
        %1263 = vmatprep.subr.mxu0 0.0
        %1264 = vmatpush1.msra.mxu0 0.0
        %1265 = vmatprep.mubr.f32.mxu0 0.0
        %1266 = vmatmul.mubr.f32.gmra.mrb[0].mxu0 %v1120
        %v1267 = vpop.f32.mrb[0].mxu0
        %v1268 = vadd.f32 0.0, %v1267
        %v1269 = vpop.f32.mrb[0].mxu0
        %v1270 = vadd.f32 0.0, %v1269
        %1271 = vdwg.mxu0
        %v1272 = vadd.f32 %v1126, %v1197
        %v1273 = vadd.f32 %v1127, %v1199
        %v1274 = vadd.f32 %v1128, %v1268
        %v1275 = vadd.f32 %v1129, %v1270
        %v1276 = vxor.u32 %v1272, 2147483648
        %v1277 = vmul.f32 %v1276, 1.442695
        %v1278 = vpow.pop %v1277
        %v1279 = vadd.f32 %v1278, 1.0
        %v1280 = vrcp.pop %v1279
        %v1281 = vmul.f32 1.0, %v1280
        %v1282 = vxor.u32 %v1273, 2147483648
        %v1283 = vmul.f32 %v1282, 1.442695
        %v1284 = vpow.pop %v1283
        %v1285 = vadd.f32 %v1284, 1.0
        %v1286 = vrcp.pop %v1285
        %v1287 = vmul.f32 1.0, %v1286
        %v1288 = vtanh.pop %v1274
        %v1289 = vxor.u32 %v1275, 2147483648
        %v1290 = vmul.f32 %v1289, 1.442695
        %v1291 = vpow.pop %v1290
        %v1292 = vadd.f32 %v1291, 1.0
        %v1293 = vrcp.pop %v1292
        %v1294 = vmul.f32 1.0, %v1293
        %v1295 = vmul.f32 %v1287, %v1121
        %v1296 = vmul.f32 %v1281, %v1288
        %v1297 = vadd.f32 %v1295, %v1296
        %v1298 = vtanh.pop %v1297
        %v1299 = vmul.f32 %v1294, %v1298
        %s1300 = sadd.s32 %s373, 4
        %v1301 = vstv %s1300
        %vm1302 = vcmp.gt.s32.totalorder %v308, %v1301
        %v1303 = vsel %vm1302, 1, 0
        %1304 = vset.pattern.permute.xlu0 0
        %1305 = vperm.xlu0 %1304, %v1303
        %v1306 = vpop.permute.xlu0 %1305
        %vm1307 = vcmp.eq.s32.totalorder %v1306, 1
        %v1308 = vsel %vm1307, %v1299, %v1120
        %v1309 = vsel %vm1307, %v1297, %v1121
        %v1310 = vsel %vm1307, %v1299, 0.0
        %s1311 = scalar_lea.vmem %s291, 32 [#allocation7]
        %1312 = vst [vmem:[%s1311] sm:$0xff] %v1310
        %s1313 = scalar_lea.vmem %s261, 160 [#allocation2]
        %v1314 = vld [vmem:[%s1313] sm:$0xff]
        %v1315 = vld [vmem:[%s1313 + $0x8] sm:$0xff]
        %v1316 = vld [vmem:[%s1313 + $0x10] sm:$0xff]
        %v1317 = vld [vmem:[%s1313 + $0x18] sm:$0xff]
        %1318 = vmatprep.subr.mxu0 %v310
        %1319 = vmatpush1.msra.mxu0 %v309
        %1320 = vmatprep.subr.mxu0 %v314
        %1321 = vmatpush1.msra.mxu0 %v313
        %1322 = vmatprep.subr.mxu0 %v318
        %1323 = vmatpush1.msra.mxu0 %v317
        %1324 = vmatprep.subr.mxu0 %v322
        %1325 = vmatpush1.msra.mxu0 %v321
        %1326 = vmatprep.subr.mxu0 %v326
        %1327 = vmatpush1.msra.mxu0 %v325
        %1328 = vmatprep.subr.mxu0 %v330
        %1329 = vmatpush1.msra.mxu0 %v329
        %1330 = vmatprep.subr.mxu0 %v334
        %1331 = vmatpush1.msra.mxu0 %v333
        %1332 = vmatprep.subr.mxu0 %v338
        %1333 = vmatpush1.msra.mxu0 %v337
        %1334 = vmatprep.subr.mxu0 %v342
        %1335 = vmatpush1.msra.mxu0 %v341
        %1336 = vmatprep.subr.mxu0 %v346
        %1337 = vmatpush1.msra.mxu0 %v345
        %1338 = vmatprep.subr.mxu0 %v350
        %1339 = vmatpush1.msra.mxu0 %v349
        %1340 = vmatprep.subr.mxu0 %v354
        %1341 = vmatpush1.msra.mxu0 %v353
        %1342 = vmatprep.subr.mxu0 %v358
        %1343 = vmatpush1.msra.mxu0 %v357
        %1344 = vmatprep.subr.mxu0 %v362
        %1345 = vmatpush1.msra.mxu0 %v361
        %1346 = vmatprep.subr.mxu0 %v366
        %1347 = vmatpush1.msra.mxu0 %v365
        %1348 = vmatprep.subr.mxu0 %v370
        %1349 = vmatpush1.msra.mxu0 %v369
        %1350 = vmatprep.subr.mxu0 0.0
        %1351 = vmatpush1.msra.mxu0 0.0
        %1352 = vmatprep.subr.mxu0 0.0
        %1353 = vmatpush1.msra.mxu0 0.0
        %1354 = vmatprep.subr.mxu0 0.0
        %1355 = vmatpush1.msra.mxu0 0.0
        %1356 = vmatprep.subr.mxu0 0.0
        %1357 = vmatpush1.msra.mxu0 0.0
        %1358 = vmatprep.subr.mxu0 0.0
        %1359 = vmatpush1.msra.mxu0 0.0
        %1360 = vmatprep.subr.mxu0 0.0
        %1361 = vmatpush1.msra.mxu0 0.0
        %1362 = vmatprep.subr.mxu0 0.0
        %1363 = vmatpush1.msra.mxu0 0.0
        %1364 = vmatprep.subr.mxu0 0.0
        %1365 = vmatpush1.msra.mxu0 0.0
        %1366 = vmatprep.subr.mxu0 0.0
        %1367 = vmatpush1.msra.mxu0 0.0
        %1368 = vmatprep.subr.mxu0 0.0
        %1369 = vmatpush1.msra.mxu0 0.0
        %1370 = vmatprep.subr.mxu0 0.0
        %1371 = vmatpush1.msra.mxu0 0.0
        %1372 = vmatprep.subr.mxu0 0.0
        %1373 = vmatpush1.msra.mxu0 0.0
        %1374 = vmatprep.subr.mxu0 0.0
        %1375 = vmatpush1.msra.mxu0 0.0
        %1376 = vmatprep.subr.mxu0 0.0
        %1377 = vmatpush1.msra.mxu0 0.0
        %1378 = vmatprep.subr.mxu0 0.0
        %1379 = vmatpush1.msra.mxu0 0.0
        %1380 = vmatprep.subr.mxu0 0.0
        %1381 = vmatpush1.msra.mxu0 0.0
        %1382 = vmatprep.mubr.f32.mxu0 0.0
        %1383 = vmatmul.mubr.f32.gmra.mrb[0].mxu0 %v1308
        %v1384 = vpop.f32.mrb[0].mxu0
        %v1385 = vadd.f32 0.0, %v1384
        %v1386 = vpop.f32.mrb[0].mxu0
        %v1387 = vadd.f32 0.0, %v1386
        %1388 = vdwg.mxu0
        %1389 = vmatprep.subr.mxu0 %v312
        %1390 = vmatpush1.msra.mxu0 %v311
        %1391 = vmatprep.subr.mxu0 %v316
        %1392 = vmatpush1.msra.mxu0 %v315
        %1393 = vmatprep.subr.mxu0 %v320
        %1394 = vmatpush1.msra.mxu0 %v319
        %1395 = vmatprep.subr.mxu0 %v324
        %1396 = vmatpush1.msra.mxu0 %v323
        %1397 = vmatprep.subr.mxu0 %v328
        %1398 = vmatpush1.msra.mxu0 %v327
        %1399 = vmatprep.subr.mxu0 %v332
        %1400 = vmatpush1.msra.mxu0 %v331
        %1401 = vmatprep.subr.mxu0 %v336
        %1402 = vmatpush1.msra.mxu0 %v335
        %1403 = vmatprep.subr.mxu0 %v340
        %1404 = vmatpush1.msra.mxu0 %v339
        %1405 = vmatprep.subr.mxu0 %v344
        %1406 = vmatpush1.msra.mxu0 %v343
        %1407 = vmatprep.subr.mxu0 %v348
        %1408 = vmatpush1.msra.mxu0 %v347
        %1409 = vmatprep.subr.mxu0 %v352
        %1410 = vmatpush1.msra.mxu0 %v351
        %1411 = vmatprep.subr.mxu0 %v356
        %1412 = vmatpush1.msra.mxu0 %v355
        %1413 = vmatprep.subr.mxu0 %v360
        %1414 = vmatpush1.msra.mxu0 %v359
        %1415 = vmatprep.subr.mxu0 %v364
        %1416 = vmatpush1.msra.mxu0 %v363
        %1417 = vmatprep.subr.mxu0 %v368
        %1418 = vmatpush1.msra.mxu0 %v367
        %1419 = vmatprep.subr.mxu0 %v372
        %1420 = vmatpush1.msra.mxu0 %v371
        %1421 = vmatprep.subr.mxu0 0.0
        %1422 = vmatpush1.msra.mxu0 0.0
        %1423 = vmatprep.subr.mxu0 0.0
        %1424 = vmatpush1.msra.mxu0 0.0
        %1425 = vmatprep.subr.mxu0 0.0
        %1426 = vmatpush1.msra.mxu0 0.0
        %1427 = vmatprep.subr.mxu0 0.0
        %1428 = vmatpush1.msra.mxu0 0.0
        %1429 = vmatprep.subr.mxu0 0.0
        %1430 = vmatpush1.msra.mxu0 0.0
        %1431 = vmatprep.subr.mxu0 0.0
        %1432 = vmatpush1.msra.mxu0 0.0
        %1433 = vmatprep.subr.mxu0 0.0
        %1434 = vmatpush1.msra.mxu0 0.0
        %1435 = vmatprep.subr.mxu0 0.0
        %1436 = vmatpush1.msra.mxu0 0.0
        %1437 = vmatprep.subr.mxu0 0.0
        %1438 = vmatpush1.msra.mxu0 0.0
        %1439 = vmatprep.subr.mxu0 0.0
        %1440 = vmatpush1.msra.mxu0 0.0
        %1441 = vmatprep.subr.mxu0 0.0
        %1442 = vmatpush1.msra.mxu0 0.0
        %1443 = vmatprep.subr.mxu0 0.0
        %1444 = vmatpush1.msra.mxu0 0.0
        %1445 = vmatprep.subr.mxu0 0.0
        %1446 = vmatpush1.msra.mxu0 0.0
        %1447 = vmatprep.subr.mxu0 0.0
        %1448 = vmatpush1.msra.mxu0 0.0
        %1449 = vmatprep.subr.mxu0 0.0
        %1450 = vmatpush1.msra.mxu0 0.0
        %1451 = vmatprep.subr.mxu0 0.0
        %1452 = vmatpush1.msra.mxu0 0.0
        %1453 = vmatprep.mubr.f32.mxu0 0.0
        %1454 = vmatmul.mubr.f32.gmra.mrb[0].mxu0 %v1308
        %v1455 = vpop.f32.mrb[0].mxu0
        %v1456 = vadd.f32 0.0, %v1455
        %v1457 = vpop.f32.mrb[0].mxu0
        %v1458 = vadd.f32 0.0, %v1457
        %1459 = vdwg.mxu0
        %v1460 = vadd.f32 %v1314, %v1385
        %v1461 = vadd.f32 %v1315, %v1387
        %v1462 = vadd.f32 %v1316, %v1456
        %v1463 = vadd.f32 %v1317, %v1458
        %v1464 = vxor.u32 %v1460, 2147483648
        %v1465 = vmul.f32 %v1464, 1.442695
        %v1466 = vpow.pop %v1465
        %v1467 = vadd.f32 %v1466, 1.0
        %v1468 = vrcp.pop %v1467
        %v1469 = vmul.f32 1.0, %v1468
        %v1470 = vxor.u32 %v1461, 2147483648
        %v1471 = vmul.f32 %v1470, 1.442695
        %v1472 = vpow.pop %v1471
        %v1473 = vadd.f32 %v1472, 1.0
        %v1474 = vrcp.pop %v1473
        %v1475 = vmul.f32 1.0, %v1474
        %v1476 = vtanh.pop %v1462
        %v1477 = vxor.u32 %v1463, 2147483648
        %v1478 = vmul.f32 %v1477, 1.442695
        %v1479 = vpow.pop %v1478
        %v1480 = vadd.f32 %v1479, 1.0
        %v1481 = vrcp.pop %v1480
        %v1482 = vmul.f32 1.0, %v1481
        %v1483 = vmul.f32 %v1475, %v1309
        %v1484 = vmul.f32 %v1469, %v1476
        %v1485 = vadd.f32 %v1483, %v1484
        %v1486 = vtanh.pop %v1485
        %v1487 = vmul.f32 %v1482, %v1486
        %s1488 = sadd.s32 %s373, 5
        %v1489 = vstv %s1488
        %vm1490 = vcmp.gt.s32.totalorder %v308, %v1489
        %v1491 = vsel %vm1490, 1, 0
        %1492 = vset.pattern.permute.xlu0 0
        %1493 = vperm.xlu0 %1492, %v1491
        %v1494 = vpop.permute.xlu0 %1493
        %vm1495 = vcmp.eq.s32.totalorder %v1494, 1
        %v1496 = vsel %vm1495, %v1487, %v1308
        %v1497 = vsel %vm1495, %v1485, %v1309
        %v1498 = vsel %vm1495, %v1487, 0.0
        %s1499 = scalar_lea.vmem %s291, 40 [#allocation7]
        %1500 = vst [vmem:[%s1499] sm:$0xff] %v1498
        %s1501 = scalar_lea.vmem %s261, 192 [#allocation2]
        %v1502 = vld [vmem:[%s1501] sm:$0xff]
        %v1503 = vld [vmem:[%s1501 + $0x8] sm:$0xff]
        %v1504 = vld [vmem:[%s1501 + $0x10] sm:$0xff]
        %v1505 = vld [vmem:[%s1501 + $0x18] sm:$0xff]
        %1506 = vmatprep.subr.mxu0 %v310
        %1507 = vmatpush1.msra.mxu0 %v309
        %1508 = vmatprep.subr.mxu0 %v314
        %1509 = vmatpush1.msra.mxu0 %v313
        %1510 = vmatprep.subr.mxu0 %v318
        %1511 = vmatpush1.msra.mxu0 %v317
        %1512 = vmatprep.subr.mxu0 %v322
        %1513 = vmatpush1.msra.mxu0 %v321
        %1514 = vmatprep.subr.mxu0 %v326
        %1515 = vmatpush1.msra.mxu0 %v325
        %1516 = vmatprep.subr.mxu0 %v330
        %1517 = vmatpush1.msra.mxu0 %v329
        %1518 = vmatprep.subr.mxu0 %v334
        %1519 = vmatpush1.msra.mxu0 %v333
        %1520 = vmatprep.subr.mxu0 %v338
        %1521 = vmatpush1.msra.mxu0 %v337
        %1522 = vmatprep.subr.mxu0 %v342
        %1523 = vmatpush1.msra.mxu0 %v341
        %1524 = vmatprep.subr.mxu0 %v346
        %1525 = vmatpush1.msra.mxu0 %v345
        %1526 = vmatprep.subr.mxu0 %v350
        %1527 = vmatpush1.msra.mxu0 %v349
        %1528 = vmatprep.subr.mxu0 %v354
        %1529 = vmatpush1.msra.mxu0 %v353
        %1530 = vmatprep.subr.mxu0 %v358
        %1531 = vmatpush1.msra.mxu0 %v357
        %1532 = vmatprep.subr.mxu0 %v362
        %1533 = vmatpush1.msra.mxu0 %v361
        %1534 = vmatprep.subr.mxu0 %v366
        %1535 = vmatpush1.msra.mxu0 %v365
        %1536 = vmatprep.subr.mxu0 %v370
        %1537 = vmatpush1.msra.mxu0 %v369
        %1538 = vmatprep.subr.mxu0 0.0
        %1539 = vmatpush1.msra.mxu0 0.0
        %1540 = vmatprep.subr.mxu0 0.0
        %1541 = vmatpush1.msra.mxu0 0.0
        %1542 = vmatprep.subr.mxu0 0.0
        %1543 = vmatpush1.msra.mxu0 0.0
        %1544 = vmatprep.subr.mxu0 0.0
        %1545 = vmatpush1.msra.mxu0 0.0
        %1546 = vmatprep.subr.mxu0 0.0
        %1547 = vmatpush1.msra.mxu0 0.0
        %1548 = vmatprep.subr.mxu0 0.0
        %1549 = vmatpush1.msra.mxu0 0.0
        %1550 = vmatprep.subr.mxu0 0.0
        %1551 = vmatpush1.msra.mxu0 0.0
        %1552 = vmatprep.subr.mxu0 0.0
        %1553 = vmatpush1.msra.mxu0 0.0
        %1554 = vmatprep.subr.mxu0 0.0
        %1555 = vmatpush1.msra.mxu0 0.0
        %1556 = vmatprep.subr.mxu0 0.0
        %1557 = vmatpush1.msra.mxu0 0.0
        %1558 = vmatprep.subr.mxu0 0.0
        %1559 = vmatpush1.msra.mxu0 0.0
        %1560 = vmatprep.subr.mxu0 0.0
        %1561 = vmatpush1.msra.mxu0 0.0
        %1562 = vmatprep.subr.mxu0 0.0
        %1563 = vmatpush1.msra.mxu0 0.0
        %1564 = vmatprep.subr.mxu0 0.0
        %1565 = vmatpush1.msra.mxu0 0.0
        %1566 = vmatprep.subr.mxu0 0.0
        %1567 = vmatpush1.msra.mxu0 0.0
        %1568 = vmatprep.subr.mxu0 0.0
        %1569 = vmatpush1.msra.mxu0 0.0
        %1570 = vmatprep.mubr.f32.mxu0 0.0
        %1571 = vmatmul.mubr.f32.gmra.mrb[0].mxu0 %v1496
        %v1572 = vpop.f32.mrb[0].mxu0
        %v1573 = vadd.f32 0.0, %v1572
        %v1574 = vpop.f32.mrb[0].mxu0
        %v1575 = vadd.f32 0.0, %v1574
        %1576 = vdwg.mxu0
        %1577 = vmatprep.subr.mxu0 %v312
        %1578 = vmatpush1.msra.mxu0 %v311
        %1579 = vmatprep.subr.mxu0 %v316
        %1580 = vmatpush1.msra.mxu0 %v315
        %1581 = vmatprep.subr.mxu0 %v320
        %1582 = vmatpush1.msra.mxu0 %v319
        %1583 = vmatprep.subr.mxu0 %v324
        %1584 = vmatpush1.msra.mxu0 %v323
        %1585 = vmatprep.subr.mxu0 %v328
        %1586 = vmatpush1.msra.mxu0 %v327
        %1587 = vmatprep.subr.mxu0 %v332
        %1588 = vmatpush1.msra.mxu0 %v331
        %1589 = vmatprep.subr.mxu0 %v336
        %1590 = vmatpush1.msra.mxu0 %v335
        %1591 = vmatprep.subr.mxu0 %v340
        %1592 = vmatpush1.msra.mxu0 %v339
        %1593 = vmatprep.subr.mxu0 %v344
        %1594 = vmatpush1.msra.mxu0 %v343
        %1595 = vmatprep.subr.mxu0 %v348
        %1596 = vmatpush1.msra.mxu0 %v347
        %1597 = vmatprep.subr.mxu0 %v352
        %1598 = vmatpush1.msra.mxu0 %v351
        %1599 = vmatprep.subr.mxu0 %v356
        %1600 = vmatpush1.msra.mxu0 %v355
        %1601 = vmatprep.subr.mxu0 %v360
        %1602 = vmatpush1.msra.mxu0 %v359
        %1603 = vmatprep.subr.mxu0 %v364
        %1604 = vmatpush1.msra.mxu0 %v363
        %1605 = vmatprep.subr.mxu0 %v368
        %1606 = vmatpush1.msra.mxu0 %v367
        %1607 = vmatprep.subr.mxu0 %v372
        %1608 = vmatpush1.msra.mxu0 %v371
        %1609 = vmatprep.subr.mxu0 0.0
        %1610 = vmatpush1.msra.mxu0 0.0
        %1611 = vmatprep.subr.mxu0 0.0
        %1612 = vmatpush1.msra.mxu0 0.0
        %1613 = vmatprep.subr.mxu0 0.0
        %1614 = vmatpush1.msra.mxu0 0.0
        %1615 = vmatprep.subr.mxu0 0.0
        %1616 = vmatpush1.msra.mxu0 0.0
        %1617 = vmatprep.subr.mxu0 0.0
        %1618 = vmatpush1.msra.mxu0 0.0
        %1619 = vmatprep.subr.mxu0 0.0
        %1620 = vmatpush1.msra.mxu0 0.0
        %1621 = vmatprep.subr.mxu0 0.0
        %1622 = vmatpush1.msra.mxu0 0.0
        %1623 = vmatprep.subr.mxu0 0.0
        %1624 = vmatpush1.msra.mxu0 0.0
        %1625 = vmatprep.subr.mxu0 0.0
        %1626 = vmatpush1.msra.mxu0 0.0
        %1627 = vmatprep.subr.mxu0 0.0
        %1628 = vmatpush1.msra.mxu0 0.0
        %1629 = vmatprep.subr.mxu0 0.0
        %1630 = vmatpush1.msra.mxu0 0.0
        %1631 = vmatprep.subr.mxu0 0.0
        %1632 = vmatpush1.msra.mxu0 0.0
        %1633 = vmatprep.subr.mxu0 0.0
        %1634 = vmatpush1.msra.mxu0 0.0
        %1635 = vmatprep.subr.mxu0 0.0
        %1636 = vmatpush1.msra.mxu0 0.0
        %1637 = vmatprep.subr.mxu0 0.0
        %1638 = vmatpush1.msra.mxu0 0.0
        %1639 = vmatprep.subr.mxu0 0.0
        %1640 = vmatpush1.msra.mxu0 0.0
        %1641 = vmatprep.mubr.f32.mxu0 0.0
        %1642 = vmatmul.mubr.f32.gmra.mrb[0].mxu0 %v1496
        %v1643 = vpop.f32.mrb[0].mxu0
        %v1644 = vadd.f32 0.0, %v1643
        %v1645 = vpop.f32.mrb[0].mxu0
        %v1646 = vadd.f32 0.0, %v1645
        %1647 = vdwg.mxu0
        %v1648 = vadd.f32 %v1502, %v1573
        %v1649 = vadd.f32 %v1503, %v1575
        %v1650 = vadd.f32 %v1504, %v1644
        %v1651 = vadd.f32 %v1505, %v1646
        %v1652 = vxor.u32 %v1648, 2147483648
        %v1653 = vmul.f32 %v1652, 1.442695
        %v1654 = vpow.pop %v1653
        %v1655 = vadd.f32 %v1654, 1.0
        %v1656 = vrcp.pop %v1655
        %v1657 = vmul.f32 1.0, %v1656
        %v1658 = vxor.u32 %v1649, 2147483648
        %v1659 = vmul.f32 %v1658, 1.442695
        %v1660 = vpow.pop %v1659
        %v1661 = vadd.f32 %v1660, 1.0
        %v1662 = vrcp.pop %v1661
        %v1663 = vmul.f32 1.0, %v1662
        %v1664 = vtanh.pop %v1650
        %v1665 = vxor.u32 %v1651, 2147483648
        %v1666 = vmul.f32 %v1665, 1.442695
        %v1667 = vpow.pop %v1666
        %v1668 = vadd.f32 %v1667, 1.0
        %v1669 = vrcp.pop %v1668
        %v1670 = vmul.f32 1.0, %v1669
        %v1671 = vmul.f32 %v1663, %v1497
        %v1672 = vmul.f32 %v1657, %v1664
        %v1673 = vadd.f32 %v1671, %v1672
        %v1674 = vtanh.pop %v1673
        %v1675 = vmul.f32 %v1670, %v1674
        %s1676 = sadd.s32 %s373, 6
        %v1677 = vstv %s1676
        %vm1678 = vcmp.gt.s32.totalorder %v308, %v1677
        %v1679 = vsel %vm1678, 1, 0
        %1680 = vset.pattern.permute.xlu0 0
        %1681 = vperm.xlu0 %1680, %v1679
        %v1682 = vpop.permute.xlu0 %1681
        %vm1683 = vcmp.eq.s32.totalorder %v1682, 1
        %v1684 = vsel %vm1683, %v1675, %v1496
        %v1685 = vsel %vm1683, %v1673, %v1497
        %v1686 = vsel %vm1683, %v1675, 0.0
        %s1687 = scalar_lea.vmem %s291, 48 [#allocation7]
        %1688 = vst [vmem:[%s1687] sm:$0xff] %v1686
        %s1689 = scalar_lea.vmem %s261, 224 [#allocation2]
        %v1690 = vld [vmem:[%s1689] sm:$0xff]
        %v1691 = vld [vmem:[%s1689 + $0x8] sm:$0xff]
        %v1692 = vld [vmem:[%s1689 + $0x10] sm:$0xff]
        %v1693 = vld [vmem:[%s1689 + $0x18] sm:$0xff]
        %1694 = vmatprep.subr.mxu0 %v310
        %1695 = vmatpush1.msra.mxu0 %v309
        %1696 = vmatprep.subr.mxu0 %v314
        %1697 = vmatpush1.msra.mxu0 %v313
        %1698 = vmatprep.subr.mxu0 %v318
        %1699 = vmatpush1.msra.mxu0 %v317
        %1700 = vmatprep.subr.mxu0 %v322
        %1701 = vmatpush1.msra.mxu0 %v321
        %1702 = vmatprep.subr.mxu0 %v326
        %1703 = vmatpush1.msra.mxu0 %v325
        %1704 = vmatprep.subr.mxu0 %v330
        %1705 = vmatpush1.msra.mxu0 %v329
        %1706 = vmatprep.subr.mxu0 %v334
        %1707 = vmatpush1.msra.mxu0 %v333
        %1708 = vmatprep.subr.mxu0 %v338
        %1709 = vmatpush1.msra.mxu0 %v337
        %1710 = vmatprep.subr.mxu0 %v342
        %1711 = vmatpush1.msra.mxu0 %v341
        %1712 = vmatprep.subr.mxu0 %v346
        %1713 = vmatpush1.msra.mxu0 %v345
        %1714 = vmatprep.subr.mxu0 %v350
        %1715 = vmatpush1.msra.mxu0 %v349
        %1716 = vmatprep.subr.mxu0 %v354
        %1717 = vmatpush1.msra.mxu0 %v353
        %1718 = vmatprep.subr.mxu0 %v358
        %1719 = vmatpush1.msra.mxu0 %v357
        %1720 = vmatprep.subr.mxu0 %v362
        %1721 = vmatpush1.msra.mxu0 %v361
        %1722 = vmatprep.subr.mxu0 %v366
        %1723 = vmatpush1.msra.mxu0 %v365
        %1724 = vmatprep.subr.mxu0 %v370
        %1725 = vmatpush1.msra.mxu0 %v369
        %1726 = vmatprep.subr.mxu0 0.0
        %1727 = vmatpush1.msra.mxu0 0.0
        %1728 = vmatprep.subr.mxu0 0.0
        %1729 = vmatpush1.msra.mxu0 0.0
        %1730 = vmatprep.subr.mxu0 0.0
        %1731 = vmatpush1.msra.mxu0 0.0
        %1732 = vmatprep.subr.mxu0 0.0
        %1733 = vmatpush1.msra.mxu0 0.0
        %1734 = vmatprep.subr.mxu0 0.0
        %1735 = vmatpush1.msra.mxu0 0.0
        %1736 = vmatprep.subr.mxu0 0.0
        %1737 = vmatpush1.msra.mxu0 0.0
        %1738 = vmatprep.subr.mxu0 0.0
        %1739 = vmatpush1.msra.mxu0 0.0
        %1740 = vmatprep.subr.mxu0 0.0
        %1741 = vmatpush1.msra.mxu0 0.0
        %1742 = vmatprep.subr.mxu0 0.0
        %1743 = vmatpush1.msra.mxu0 0.0
        %1744 = vmatprep.subr.mxu0 0.0
        %1745 = vmatpush1.msra.mxu0 0.0
        %1746 = vmatprep.subr.mxu0 0.0
        %1747 = vmatpush1.msra.mxu0 0.0
        %1748 = vmatprep.subr.mxu0 0.0
        %1749 = vmatpush1.msra.mxu0 0.0
        %1750 = vmatprep.subr.mxu0 0.0
        %1751 = vmatpush1.msra.mxu0 0.0
        %1752 = vmatprep.subr.mxu0 0.0
        %1753 = vmatpush1.msra.mxu0 0.0
        %1754 = vmatprep.subr.mxu0 0.0
        %1755 = vmatpush1.msra.mxu0 0.0
        %1756 = vmatprep.subr.mxu0 0.0
        %1757 = vmatpush1.msra.mxu0 0.0
        %1758 = vmatprep.mubr.f32.mxu0 0.0
        %1759 = vmatmul.mubr.f32.gmra.mrb[0].mxu0 %v1684
        %v1760 = vpop.f32.mrb[0].mxu0
        %v1761 = vadd.f32 0.0, %v1760
        %v1762 = vpop.f32.mrb[0].mxu0
        %v1763 = vadd.f32 0.0, %v1762
        %1764 = vdwg.mxu0
        %1765 = vmatprep.subr.mxu0 %v312
        %1766 = vmatpush1.msra.mxu0 %v311
        %1767 = vmatprep.subr.mxu0 %v316
        %1768 = vmatpush1.msra.mxu0 %v315
        %1769 = vmatprep.subr.mxu0 %v320
        %1770 = vmatpush1.msra.mxu0 %v319
        %1771 = vmatprep.subr.mxu0 %v324
        %1772 = vmatpush1.msra.mxu0 %v323
        %1773 = vmatprep.subr.mxu0 %v328
        %1774 = vmatpush1.msra.mxu0 %v327
        %1775 = vmatprep.subr.mxu0 %v332
        %1776 = vmatpush1.msra.mxu0 %v331
        %1777 = vmatprep.subr.mxu0 %v336
        %1778 = vmatpush1.msra.mxu0 %v335
        %1779 = vmatprep.subr.mxu0 %v340
        %1780 = vmatpush1.msra.mxu0 %v339
        %1781 = vmatprep.subr.mxu0 %v344
        %1782 = vmatpush1.msra.mxu0 %v343
        %1783 = vmatprep.subr.mxu0 %v348
        %1784 = vmatpush1.msra.mxu0 %v347
        %1785 = vmatprep.subr.mxu0 %v352
        %1786 = vmatpush1.msra.mxu0 %v351
        %1787 = vmatprep.subr.mxu0 %v356
        %1788 = vmatpush1.msra.mxu0 %v355
        %1789 = vmatprep.subr.mxu0 %v360
        %1790 = vmatpush1.msra.mxu0 %v359
        %1791 = vmatprep.subr.mxu0 %v364
        %1792 = vmatpush1.msra.mxu0 %v363
        %1793 = vmatprep.subr.mxu0 %v368
        %1794 = vmatpush1.msra.mxu0 %v367
        %1795 = vmatprep.subr.mxu0 %v372
        %1796 = vmatpush1.msra.mxu0 %v371
        %1797 = vmatprep.subr.mxu0 0.0
        %1798 = vmatpush1.msra.mxu0 0.0
        %1799 = vmatprep.subr.mxu0 0.0
        %1800 = vmatpush1.msra.mxu0 0.0
        %1801 = vmatprep.subr.mxu0 0.0
        %1802 = vmatpush1.msra.mxu0 0.0
        %1803 = vmatprep.subr.mxu0 0.0
        %1804 = vmatpush1.msra.mxu0 0.0
        %1805 = vmatprep.subr.mxu0 0.0
        %1806 = vmatpush1.msra.mxu0 0.0
        %1807 = vmatprep.subr.mxu0 0.0
        %1808 = vmatpush1.msra.mxu0 0.0
        %1809 = vmatprep.subr.mxu0 0.0
        %1810 = vmatpush1.msra.mxu0 0.0
        %1811 = vmatprep.subr.mxu0 0.0
        %1812 = vmatpush1.msra.mxu0 0.0
        %1813 = vmatprep.subr.mxu0 0.0
        %1814 = vmatpush1.msra.mxu0 0.0
        %1815 = vmatprep.subr.mxu0 0.0
        %1816 = vmatpush1.msra.mxu0 0.0
        %1817 = vmatprep.subr.mxu0 0.0
        %1818 = vmatpush1.msra.mxu0 0.0
        %1819 = vmatprep.subr.mxu0 0.0
        %1820 = vmatpush1.msra.mxu0 0.0
        %1821 = vmatprep.subr.mxu0 0.0
        %1822 = vmatpush1.msra.mxu0 0.0
        %1823 = vmatprep.subr.mxu0 0.0
        %1824 = vmatpush1.msra.mxu0 0.0
        %1825 = vmatprep.subr.mxu0 0.0
        %1826 = vmatpush1.msra.mxu0 0.0
        %1827 = vmatprep.subr.mxu0 0.0
        %1828 = vmatpush1.msra.mxu0 0.0
        %1829 = vmatprep.mubr.f32.mxu0 0.0
        %1830 = vmatmul.mubr.f32.gmra.mrb[0].mxu0 %v1684
        %v1831 = vpop.f32.mrb[0].mxu0
        %v1832 = vadd.f32 0.0, %v1831
        %v1833 = vpop.f32.mrb[0].mxu0
        %v1834 = vadd.f32 0.0, %v1833
        %1835 = vdwg.mxu0
        %v1836 = vadd.f32 %v1690, %v1761
        %v1837 = vadd.f32 %v1691, %v1763
        %v1838 = vadd.f32 %v1692, %v1832
        %v1839 = vadd.f32 %v1693, %v1834
        %v1840 = vxor.u32 %v1836, 2147483648
        %v1841 = vmul.f32 %v1840, 1.442695
        %v1842 = vpow.pop %v1841
        %v1843 = vadd.f32 %v1842, 1.0
        %v1844 = vrcp.pop %v1843
        %v1845 = vmul.f32 1.0, %v1844
        %v1846 = vxor.u32 %v1837, 2147483648
        %v1847 = vmul.f32 %v1846, 1.442695
        %v1848 = vpow.pop %v1847
        %v1849 = vadd.f32 %v1848, 1.0
        %v1850 = vrcp.pop %v1849
        %v1851 = vmul.f32 1.0, %v1850
        %v1852 = vtanh.pop %v1838
        %v1853 = vxor.u32 %v1839, 2147483648
        %v1854 = vmul.f32 %v1853, 1.442695
        %v1855 = vpow.pop %v1854
        %v1856 = vadd.f32 %v1855, 1.0
        %v1857 = vrcp.pop %v1856
        %v1858 = vmul.f32 1.0, %v1857
        %v1859 = vmul.f32 %v1851, %v1685
        %v1860 = vmul.f32 %v1845, %v1852
        %v1861 = vadd.f32 %v1859, %v1860
        %v1862 = vtanh.pop %v1861
        %v1863 = vmul.f32 %v1858, %v1862
        %s1864 = sadd.s32 %s373, 7
        %v1865 = vstv %s1864
        %vm1866 = vcmp.gt.s32.totalorder %v308, %v1865
        %v1867 = vsel %vm1866, 1, 0
        %1868 = vset.pattern.permute.xlu0 0
        %1869 = vperm.xlu0 %1868, %v1867
        %v1870 = vpop.permute.xlu0 %1869
        %vm1871 = vcmp.eq.s32.totalorder %v1870, 1
        %v1872 = vsel %vm1871, %v1863, %v1684
        %v1873 = vsel %vm1871, %v1861, %v1685
        %v1874 = vsel %vm1871, %v1863, 0.0
        %s1875 = scalar_lea.vmem %s291, 56 [#allocation7]
        %1876 = vst [vmem:[%s1875] sm:$0xff] %v1874
        %1877 = vst [vmem:[#allocation8] sm:$0xff] %v1872
        %1878 = vst [vmem:[#allocation10] sm:$0xff] %v1873
        %s1879 = sand.u32 %s122, 1
        %s1880 = scalar_lea.sflag [#allocation4], %s1879
        %s1881 = sand.u32 %s122, 1
        %s1882 = smul.addr %s1881, 64
        %s1883 = scalar_lea.vmem [#allocation7], %s1882
        // Predicated region
        $region45: #{tpu_custom_call.1} parent=31 // pred_check
          %p1884 = pneg %p132
        $region46: #{tpu_custom_call.1} parent=31 // pred_check_branch
          %1886 = sbr.rel (%p1884) target = $region48
        $region47: #{tpu_custom_call.1} parent=31 // pred_region
          %s1887 = smul.u32 8, %s30
          %s1889 = ssub.s32 1024, 1024
          %1890 = vsyncadd %s1880, %s1889
          %s1891 = sadd.s32 %s29, %s1887
          %s1892 = smul.addr %s1891, 128
          %s1893 = scalar_lea.hbm %s3, %s1892
          %s1894 = sshll.u32 %s1883, 4
          %s1895 = int_to_ptr.vmem [resolvable:$true] %s1894
          %1900 = dma.vmem_to_hbm [thread:$0]  %s1895, 1024, %s1893, %s1880, 128, 128, 8
        $region48: #{tpu_custom_call.1} parent=31 // pred_fallthru
          _
        // Predicated region
        $region49: #{tpu_custom_call.1} parent=31 // pred_check
          %p1901 = pneg %p158
        $region50: #{tpu_custom_call.1} parent=31 // pred_check_branch
          %1903 = sbr.rel (%p1901) target = $region52
        $region51: #{tpu_custom_call.1} parent=31 // pred_region
          %s1905 = ssub.s32 128, 128
          %1906 = vsyncadd [#allocation9], %s1905
          %s1907 = smul.addr %s29, 128
          %s1908 = scalar_lea.hbm %s4, %s1907
          %s1910 = sshll.u32 [#allocation8], 4
          %s1911 = int_to_ptr.vmem [resolvable:$true] %s1910
          %1913 = dma.vmem_to_hbm [thread:$0]  %s1911, 128, %s1908, [#allocation9]
        $region52: #{tpu_custom_call.1} parent=31 // pred_fallthru
          _
        // Predicated region
        $region53: #{tpu_custom_call.1} parent=31 // pred_check
          %p1914 = pneg %p184
        $region54: #{tpu_custom_call.1} parent=31 // pred_check_branch
          %1916 = sbr.rel (%p1914) target = $region56
        $region55: #{tpu_custom_call.1} parent=31 // pred_region
          %s1918 = ssub.s32 128, 128
          %1919 = vsyncadd [#allocation9], %s1918
          %s1920 = smul.addr %s29, 128
          %s1921 = scalar_lea.hbm %s5, %s1920
          %s1923 = sshll.u32 [#allocation10], 4
          %s1924 = int_to_ptr.vmem [resolvable:$true] %s1923
          %1926 = dma.vmem_to_hbm [thread:$0]  %s1924, 128, %s1921, [#allocation9]
        $region56: #{tpu_custom_call.1} parent=31 // pred_fallthru
          _
        // Predicated region
        $region57: #{tpu_custom_call.1} parent=31 // pred_check
          %p1927 = pneg %p158
        $region58: #{tpu_custom_call.1} parent=31 // pred_check_branch
          %1929 = sbr.rel (%p1927) target = $region60
        $region59: #{tpu_custom_call.1} parent=31 // pred_region
          %1930 = dma.done [#allocation9], 128
        $region60: #{tpu_custom_call.1} parent=31 // pred_fallthru
          _
        // Predicated region
        $region61: #{tpu_custom_call.1} parent=31 // pred_check
          %p1931 = pneg %p184
        $region62: #{tpu_custom_call.1} parent=31 // pred_check_branch
          %1933 = sbr.rel (%p1931) target = $region64
        $region63: #{tpu_custom_call.1} parent=31 // pred_region
          %1934 = dma.done [#allocation9], 128
        $region64: #{tpu_custom_call.1} parent=31 // pred_fallthru
          _
      $region32: #{tpu_custom_call.1} parent=5 // pred_fallthru
        _
      %p1935 = scmp.le.s32.totalorder 2, %s20
      // Predicated region
      $region65: #{tpu_custom_call.1} parent=5 // pred_check
        %p1936 = pneg %p1935
      $region66: #{tpu_custom_call.1} parent=5 // pred_check_branch
        %1938 = sbr.rel (%p1936) target = $region68
      $region67: #{tpu_custom_call.1} parent=5 // pred_region
        %s1939 = ssub.s32 %s20, 2
        // Predicated region
        $region69: #{tpu_custom_call.1} parent=67 // pred_check
          %p1940 = pneg %p138
        $region70: #{tpu_custom_call.1} parent=67 // pred_check_branch
          %1942 = sbr.rel (%p1940) target = $region72
        $region71: #{tpu_custom_call.1} parent=67 // pred_region
          %s1943 = sand.u32 %s123, 1
          %s1944 = scalar_lea.sflag [#allocation4], %s1943
          %s1945 = sand.u32 %s123, 1
          %s1946 = smul.addr %s1945, 64
          %s1947 = scalar_lea.vmem [#allocation7], %s1946
          %1948 = dma.done %s1944, 1024
        $region72: #{tpu_custom_call.1} parent=67 // pred_fallthru
          _
      $region68: #{tpu_custom_call.1} parent=5 // pred_fallthru
        _
    $region6: #{tpu_custom_call.1} parent=1 // loop_footer
      %s24 = sadd.s32 1, %s20
    $region7: #{tpu_custom_call.1} parent=1 // loop_footer_branch
      %19 = sbr.rel target = $region3
    $region8: #{tpu_custom_call.1} parent=1 // loop_exit
      _
    %1949 = vsyncpa [#allocation3], 1
    %s1950 = scalar_lea.sflag [#allocation3], 1
    %1951 = vsyncpa %s1950, 1
    %1952 = vsyncpa [#allocation6], 1
    %1953 = vsyncpa [#allocation4], 1
    %s1954 = scalar_lea.sflag [#allocation4], 1
    %1955 = vsyncpa %s1954, 1
    %1956 = vsyncpa [#allocation9], 1

</llo_original>
